<compile_context>
chip_gen: v7x
topology: tpu7x:2x2x1
jax: 0.10.0
libtpu: 0.0.40
codegen_flags: <defaults>
</compile_context>

<pallas_src>
import jax
import jax.numpy as jnp
import numpy as np
from jax import lax
from jax.experimental import pallas as pl
from jax.experimental.pallas import tpu as pltpu

# ---- synthetic config: small alphabet / batch / length, module-default feature dims ----
NAATOKENS = 10
D_INIT = 2 * NAATOKENS + 2 + 2     # 24
D_MSA = 256                        # nn.Linear / emb_q width   (module default)
D_PAIR = 128                       # emb_left/right/pos width  (module default)
D_STATE = 32                       # emb_state width           (module default)
MINPOS = -32
MAXPOS = 32
NBIN = MAXPOS - MINPOS + 1         # 65


def msa_emb_kernel(msa_ref, oh_ref, diff_ref, chain_ref,
                   w_ref, b_ref, res_tab_ref, pos_tab_ref,
                   msa_out_ref, pair_out_ref, state_out_ref):
    f32 = jnp.float32
    NL, _ = msa_ref.shape                      # N*L rows of the flattened MSA
    L, _ = oh_ref.shape
    N = NL // L
    d_msa = w_ref.shape[1]
    d_pair = pos_tab_ref.shape[1]
    n_pc = pos_tab_ref.shape[0]                # NBIN + 2  (pos buckets + 2 chain rows)
    nbin = n_pc - 2
    tile_rows = pair_out_ref.shape[0]          # TL * L
    TL = tile_rows // L

    t = pl.program_id(1)                       # pair-row tile index
    oh = oh_ref[...]                           # (L, A) one-hot sequence

    # ---------------- MSA + state branches: once per batch element ----------------
    @pl.when(t == 0)
    def _():
        # one fused per-residue lookup matmul: columns = [q | left | right | state]
        qs = jnp.dot(oh, res_tab_ref[...], preferred_element_type=f32)    # (L, d_res)
        q = qs[:, :d_msa]                                                 # (L, d_msa)
        state = qs[:, d_msa + 2 * d_pair:]                                # (L, d_state)

        # Linear(d_init -> d_msa) directly on the flat (N*L, d_init) tile (no reshape).
        y = jnp.dot(msa_ref[...], w_ref[...], preferred_element_type=f32) + b_ref[...]
        q_b = jnp.broadcast_to(q[None, :, :], (N, L, d_msa)).reshape(NL, d_msa)
        msa_out_ref[...] = y + q_b                                        # lane-dense store
        state_out_ref[...] = state

    # ---------------- Pair branch: rows i in [t*TL, (t+1)*TL), flat layout ----------------
    # left[j] for all j (needed by every tile), right[i] only for this tile's rows.
    left = jnp.dot(oh, res_tab_ref[:, d_msa:d_msa + d_pair],
                   preferred_element_type=f32)                            # (L, d_pair)
    i0 = pl.multiple_of(t * TL, TL)
    oh_i = oh_ref[pl.ds(i0, TL), :]                                       # (TL, A)
    right = jnp.dot(oh_i, res_tab_ref[:, d_msa + d_pair:d_msa + 2 * d_pair],
                    preferred_element_type=f32)                           # (TL, d_pair)

    # fused PositionalEncoding2D: two-hot (bucket, chain) -> one matmul vs [ptab; ctab]
    diff = diff_ref[...]                                                  # (TL*L, 1) int32
    chain = chain_ref[...]                                                # (TL*L, 1) int32
    seqsep = jnp.where(chain == 1, diff, 100)
    ib = jnp.clip(seqsep - MINPOS, 0, nbin - 1)                           # bucket column
    ic = nbin + chain                                                     # chain column
    cols = lax.broadcasted_iota(jnp.int32, (tile_rows, n_pc), 1)
    two_hot = ((cols == ib) | (cols == ic)).astype(f32)                   # (TL*L, NBIN+2)
    pos_chain = jnp.dot(two_hot, pos_tab_ref[...],
                        preferred_element_type=f32)                       # (TL*L, d_pair)

    # flat row r = (i - t*TL)*L + j  ->  left[j] + right[i] + pos_chain[r]
    left_b = jnp.broadcast_to(left[None, :, :], (TL, L, d_pair)).reshape(tile_rows, d_pair)
    right_b = jnp.broadcast_to(right[:, None, :], (TL, L, d_pair)).reshape(tile_rows, d_pair)
    pair_out_ref[...] = left_b + right_b + pos_chain                      # lane-dense store


def msa_emb_forward(msa, seq, idx, same_chain, params):
    B, N, L, d_init = msa.shape
    A = NAATOKENS
    W, bias, qtab, ltab, rtab, stab, ptab, ctab = params

    # ---- wrapper-side layout plumbing (free XLA reshapes; no relayouts in the kernel) ----
    msa_flat = msa.reshape(B, N * L, d_init)
    oh = jax.nn.one_hot(seq, A, dtype=jnp.float32)                        # (B, L, A)
    idx = idx.astype(jnp.int32)
    diff = (idx[:, None, :] - idx[:, :, None]).reshape(B, L * L, 1)       # idx[j] - idx[i]
    chain = same_chain.astype(jnp.int32).reshape(B, L * L, 1)
    bias2 = bias.reshape(1, D_MSA)
    res_tab = jnp.concatenate([qtab, ltab, rtab, stab], axis=1)           # (A, d_res)
    pos_tab = jnp.concatenate([ptab, ctab], axis=0)                       # (NBIN+2, d_pair)
    d_res = res_tab.shape[1]

    # pair-row tiling keeps the double-buffered pair block within scoped VMEM at large L
    TL = L if L <= 128 else 128
    assert L % TL == 0
    NT = L // TL
    grid = (B, NT)

    in_specs = [
        pl.BlockSpec((None, N * L, d_init), lambda b, t: (b, 0, 0)),      # msa (flat)
        pl.BlockSpec((None, L, A), lambda b, t: (b, 0, 0)),               # seq one-hot
        pl.BlockSpec((None, TL * L, 1), lambda b, t: (b, t, 0)),          # diff (flat)
        pl.BlockSpec((None, TL * L, 1), lambda b, t: (b, t, 0)),          # same_chain (flat)
        pl.BlockSpec((d_init, D_MSA), lambda b, t: (0, 0)),               # Linear W
        pl.BlockSpec((1, D_MSA), lambda b, t: (0, 0)),                    # Linear bias
        pl.BlockSpec((A, d_res), lambda b, t: (0, 0)),                    # [q|left|right|state]
        pl.BlockSpec((NBIN + 2, D_PAIR), lambda b, t: (0, 0)),            # [ptab; ctab]
    ]
    out_specs = [
        pl.BlockSpec((None, N * L, D_MSA), lambda b, t: (b, 0, 0)),
        pl.BlockSpec((None, TL * L, D_PAIR), lambda b, t: (b, t, 0)),
        pl.BlockSpec((None, L, D_STATE), lambda b, t: (b, 0, 0)),
    ]
    out_shape = [
        jax.ShapeDtypeStruct((B, N * L, D_MSA), jnp.float32),
        jax.ShapeDtypeStruct((B, L * L, D_PAIR), jnp.float32),
        jax.ShapeDtypeStruct((B, L, D_STATE), jnp.float32),
    ]

    fn = pl.pallas_call(
        msa_emb_kernel,
        out_shape=out_shape,
        grid_spec=pltpu.PrefetchScalarGridSpec(
            num_scalar_prefetch=0,
            grid=grid,
            in_specs=in_specs,
            out_specs=out_specs,
        ),
        compiler_params=pltpu.CompilerParams(
            dimension_semantics=("parallel", "arbitrary")),
    )
    msa_o, pair_o, state_o = fn(msa_flat, oh, diff, chain, W, bias2, res_tab, pos_tab)
    return (msa_o.reshape(B, N, L, D_MSA),
            pair_o.reshape(B, L, L, D_PAIR),
            state_o)


def reference(msa, seq, idx, same_chain, params):
    """Pure-JAX reference matching the PyTorch forward semantics."""
    W, bias, qtab, ltab, rtab, stab, ptab, ctab = params
    msa_o = msa @ W + bias[None, None, None, :] + qtab[seq][:, None]      # (B,N,L,d_msa)
    left = ltab[seq][:, None]                                             # (B,1,L,d_pair)
    right = rtab[seq][:, :, None]                                         # (B,L,1,d_pair)
    idx = idx.astype(jnp.int32)
    diff = idx[:, None, :] - idx[:, :, None]
    seqsep = jnp.where(same_chain == 1, diff, 100)
    ib = jnp.clip(seqsep - MINPOS, 0, NBIN - 1)
    pair = left + right + ptab[ib] + ctab[same_chain.astype(jnp.int32)]
    state = stab[seq]
    return msa_o, pair, state


if __name__ == "__main__":
    key = jax.random.PRNGKey(0)
    keys = jax.random.split(key, 10)
    B, N, L = 2, 4, 8

    def lecun(k, shape):
        fan_in = shape[0]
        return (jax.random.normal(k, shape, jnp.float32) /
                jnp.sqrt(jnp.float32(fan_in)))

    W = lecun(keys[0], (D_INIT, D_MSA))
    bias = jnp.zeros((D_MSA,), jnp.float32)          # nn.init.zeros_(emb.bias)
    qtab = lecun(keys[1], (NAATOKENS, D_MSA))
    ltab = lecun(keys[2], (NAATOKENS, D_PAIR))
    rtab = lecun(keys[3], (NAATOKENS, D_PAIR))
    stab = lecun(keys[4], (NAATOKENS, D_STATE))
    ptab = lecun(keys[5], (NBIN, D_PAIR))            # PositionalEncoding2D.emb
    ctab = lecun(keys[6], (2, D_PAIR))               # PositionalEncoding2D.emb_chain
    params = (W, bias, qtab, ltab, rtab, stab, ptab, ctab)

    msa = jax.random.normal(keys[7], (B, N, L, D_INIT), jnp.float32)
    seq = jax.random.randint(keys[8], (B, L), 0, NAATOKENS)
    idx = jnp.broadcast_to(jnp.arange(L, dtype=jnp.int32)[None, :], (B, L))
    chain_id = (jnp.arange(L) >= L // 2).astype(jnp.int32)               # two chains
    same_chain = jnp.broadcast_to(
        (chain_id[:, None] == chain_id[None, :]).astype(jnp.int32)[None], (B, L, L))

    msa_o, pair_o, state_o = msa_emb_forward(msa, seq, idx, same_chain, params)
    jax.block_until_ready((msa_o, pair_o, state_o))

    ref_msa, ref_pair, ref_state = reference(msa, seq, idx, same_chain, params)
    assert np.allclose(np.asarray(msa_o), np.asarray(ref_msa), atol=1e-3, rtol=1e-3)
    assert np.allclose(np.asarray(pair_o), np.asarray(ref_pair), atol=1e-3, rtol=1e-3)
    assert np.allclose(np.asarray(state_o), np.asarray(ref_state), atol=1e-3, rtol=1e-3)
    print("KERNEL_OK")
</pallas_src>

<mosaic_0001>
module attributes {stable_mosaic.version = 11 : i64} {
  func.func @msa_emb_kernel(%arg0: i32, %arg1: i32, %arg2: memref<1x32x24xf32, #tpu.memory_space<vmem>>, %arg3: memref<1x8x10xf32, #tpu.memory_space<vmem>>, %arg4: memref<1x64x1xi32, #tpu.memory_space<vmem>>, %arg5: memref<1x64x1xi32, #tpu.memory_space<vmem>>, %arg6: memref<24x256xf32, #tpu.memory_space<vmem>>, %arg7: memref<1x256xf32, #tpu.memory_space<vmem>>, %arg8: memref<10x544xf32, #tpu.memory_space<vmem>>, %arg9: memref<67x128xf32, #tpu.memory_space<vmem>>, %arg10: memref<1x32x256xf32, #tpu.memory_space<vmem>>, %arg11: memref<1x64x128xf32, #tpu.memory_space<vmem>>, %arg12: memref<1x8x32xf32, #tpu.memory_space<vmem>>) attributes {dimension_semantics = [#tpu.dimension_semantics<parallel>, #tpu.dimension_semantics<arbitrary>], iteration_bounds = array<i64: 2, 1>, scalar_prefetch = 0 : i64, scratch_operands = 0 : i64, tpu.core_type = #tpu.core_type<tc>, window_params = [{transform_indices = @transform_0, window_bounds = array<i64: 1, 32, 24>}, {transform_indices = @transform_1, window_bounds = array<i64: 1, 8, 10>}, {transform_indices = @transform_2, window_bounds = array<i64: 1, 64, 1>}, {transform_indices = @transform_3, window_bounds = array<i64: 1, 64, 1>}, {pipeline_mode = #tpu.pipeline_mode<synchronous>, transform_indices = @transform_4, window_bounds = array<i64: 24, 256>}, {pipeline_mode = #tpu.pipeline_mode<synchronous>, transform_indices = @transform_5, window_bounds = array<i64: 1, 256>}, {pipeline_mode = #tpu.pipeline_mode<synchronous>, transform_indices = @transform_6, window_bounds = array<i64: 10, 544>}, {pipeline_mode = #tpu.pipeline_mode<synchronous>, transform_indices = @transform_7, window_bounds = array<i64: 67, 128>}, {transform_indices = @transform_8, window_bounds = array<i64: 1, 32, 256>}, {transform_indices = @transform_9, window_bounds = array<i64: 1, 64, 128>}, {transform_indices = @transform_10, window_bounds = array<i64: 1, 8, 32>}]} {
    %c0 = arith.constant 0 : index
    %c0_0 = arith.constant 0 : index
    %c0_1 = arith.constant 0 : index
    %0 = vector.load %arg3[%c0, %c0_0, %c0_1] : memref<1x8x10xf32, #tpu.memory_space<vmem>>, vector<1x8x10xf32>
    %1 = vector.shape_cast %0 : vector<1x8x10xf32> to vector<8x10xf32>
    %c0_i32 = arith.constant 0 : i32
    %2 = arith.cmpi eq, %arg1, %c0_i32 : i32
    %3 = arith.extui %2 : i1 to i32
    %c0_i32_2 = arith.constant 0 : i32
    %4 = arith.cmpi ne, %3, %c0_i32_2 : i32
    scf.if %4 {
      %c0_21 = arith.constant 0 : index
      %c0_22 = arith.constant 0 : index
      %53 = vector.load %arg8[%c0_21, %c0_22] : memref<10x544xf32, #tpu.memory_space<vmem>>, vector<10x544xf32>
      %cst_23 = arith.constant dense<0.000000e+00> : vector<8x544xf32>
      %54 = tpu.matmul %1, %53, %cst_23 {dimension_numbers = #tpu.dot_dimension_numbers<[1], [0], [0], [1], [0, 0, 1, 1], [], []>} : vector<8x10xf32>, vector<10x544xf32>, vector<8x544xf32> -> vector<8x544xf32>
      %55 = vector.extract_strided_slice %54 {offsets = [0, 0], sizes = [8, 256], strides = [1, 1]} : vector<8x544xf32> to vector<8x256xf32>
      %56 = vector.extract_strided_slice %54 {offsets = [0, 512], sizes = [8, 32], strides = [1, 1]} : vector<8x544xf32> to vector<8x32xf32>
      %c0_24 = arith.constant 0 : index
      %c0_25 = arith.constant 0 : index
      %c0_26 = arith.constant 0 : index
      %57 = vector.load %arg2[%c0_24, %c0_25, %c0_26] : memref<1x32x24xf32, #tpu.memory_space<vmem>>, vector<1x32x24xf32>
      %58 = vector.shape_cast %57 : vector<1x32x24xf32> to vector<32x24xf32>
      %c0_27 = arith.constant 0 : index
      %c0_28 = arith.constant 0 : index
      %59 = vector.load %arg6[%c0_27, %c0_28] : memref<24x256xf32, #tpu.memory_space<vmem>>, vector<24x256xf32>
      %cst_29 = arith.constant dense<0.000000e+00> : vector<32x256xf32>
      %60 = tpu.matmul %58, %59, %cst_29 {dimension_numbers = #tpu.dot_dimension_numbers<[1], [0], [0], [1], [0, 0, 1, 1], [], []>} : vector<32x24xf32>, vector<24x256xf32>, vector<32x256xf32> -> vector<32x256xf32>
      %c0_30 = arith.constant 0 : index
      %c0_31 = arith.constant 0 : index
      %61 = vector.load %arg7[%c0_30, %c0_31] : memref<1x256xf32, #tpu.memory_space<vmem>>, vector<1x256xf32>
      %62 = vector.broadcast %61 : vector<1x256xf32> to vector<32x256xf32>
      %63 = arith.addf %60, %62 : vector<32x256xf32>
      %64 = vector.shape_cast %55 : vector<8x256xf32> to vector<1x8x256xf32>
      %65 = vector.shape_cast %64 : vector<1x8x256xf32> to vector<1x8x256xf32>
      %66 = vector.broadcast %65 : vector<1x8x256xf32> to vector<4x8x256xf32>
      %67 = vector.shape_cast %66 : vector<4x8x256xf32> to vector<32x256xf32>
      %68 = arith.addf %63, %67 : vector<32x256xf32>
      %c0_32 = arith.constant 0 : index
      %c0_33 = arith.constant 0 : index
      %c0_34 = arith.constant 0 : index
      %69 = vector.load %arg10[%c0_32, %c0_33, %c0_34] : memref<1x32x256xf32, #tpu.memory_space<vmem>>, vector<1x32x256xf32>
      %70 = vector.shape_cast %69 : vector<1x32x256xf32> to vector<32x256xf32>
      %71 = vector.shape_cast %68 : vector<32x256xf32> to vector<1x32x256xf32>
      tpu.vector_store %arg10[%c0_32, %c0_33, %c0_34], %71 {strides = array<i32>} : memref<1x32x256xf32, #tpu.memory_space<vmem>>, vector<1x32x256xf32>,
      %c0_35 = arith.constant 0 : index
      %c0_36 = arith.constant 0 : index
      %c0_37 = arith.constant 0 : index
      %72 = vector.load %arg12[%c0_35, %c0_36, %c0_37] : memref<1x8x32xf32, #tpu.memory_space<vmem>>, vector<1x8x32xf32>
      %73 = vector.shape_cast %72 : vector<1x8x32xf32> to vector<8x32xf32>
      %74 = vector.shape_cast %56 : vector<8x32xf32> to vector<1x8x32xf32>
      tpu.vector_store %arg12[%c0_35, %c0_36, %c0_37], %74 {strides = array<i32>} : memref<1x8x32xf32, #tpu.memory_space<vmem>>, vector<1x8x32xf32>,
    } else {
    }
    %c0_3 = arith.constant 0 : index
    %c256 = arith.constant 256 : index
    %5 = vector.load %arg8[%c0_3, %c256] : memref<10x544xf32, #tpu.memory_space<vmem>>, vector<10x128xf32>
    %cst = arith.constant dense<0.000000e+00> : vector<8x128xf32>
    %6 = tpu.matmul %1, %5, %cst {dimension_numbers = #tpu.dot_dimension_numbers<[1], [0], [0], [1], [0, 0, 1, 1], [], []>} : vector<8x10xf32>, vector<10x128xf32>, vector<8x128xf32> -> vector<8x128xf32>
    %c8_i32 = arith.constant 8 : i32
    %7 = arith.muli %arg1, %c8_i32 : i32
    %8 = tpu.assume_multiple %7, 8 : i32
    %c0_4 = arith.constant 0 : index
    %9 = arith.index_cast %8 : i32 to index
    %c0_5 = arith.constant 0 : index
    %10 = vector.load %arg3[%c0_4, %9, %c0_5] : memref<1x8x10xf32, #tpu.memory_space<vmem>>, vector<1x8x10xf32>
    %11 = vector.shape_cast %10 : vector<1x8x10xf32> to vector<8x10xf32>
    %c0_6 = arith.constant 0 : index
    %c384 = arith.constant 384 : index
    %12 = vector.load %arg8[%c0_6, %c384] : memref<10x544xf32, #tpu.memory_space<vmem>>, vector<10x128xf32>
    %cst_7 = arith.constant dense<0.000000e+00> : vector<8x128xf32>
    %13 = tpu.matmul %11, %12, %cst_7 {dimension_numbers = #tpu.dot_dimension_numbers<[1], [0], [0], [1], [0, 0, 1, 1], [], []>} : vector<8x10xf32>, vector<10x128xf32>, vector<8x128xf32> -> vector<8x128xf32>
    %c0_8 = arith.constant 0 : index
    %c0_9 = arith.constant 0 : index
    %c0_10 = arith.constant 0 : index
    %14 = vector.load %arg4[%c0_8, %c0_9, %c0_10] : memref<1x64x1xi32, #tpu.memory_space<vmem>>, vector<1x64x1xi32>
    %15 = vector.shape_cast %14 : vector<1x64x1xi32> to vector<64x1xi32>
    %c0_11 = arith.constant 0 : index
    %c0_12 = arith.constant 0 : index
    %c0_13 = arith.constant 0 : index
    %16 = vector.load %arg5[%c0_11, %c0_12, %c0_13] : memref<1x64x1xi32, #tpu.memory_space<vmem>>, vector<1x64x1xi32>
    %17 = vector.shape_cast %16 : vector<1x64x1xi32> to vector<64x1xi32>
    %c1_i32 = arith.constant 1 : i32
    %18 = vector.broadcast %c1_i32 : i32 to vector<64x1xi32>
    %19 = arith.cmpi eq, %17, %18 : vector<64x1xi32>
    %c100_i32 = arith.constant 100 : i32
    %20 = vector.broadcast %c100_i32 : i32 to vector<64x1xi32>
    %21 = arith.select %19, %15, %20 : vector<64x1xi1>, vector<64x1xi32>
    %c-32_i32 = arith.constant -32 : i32
    %22 = vector.broadcast %c-32_i32 : i32 to vector<64x1xi32>
    %23 = arith.subi %21, %22 : vector<64x1xi32>
    %c0_i32_14 = arith.constant 0 : i32
    %c64_i32 = arith.constant 64 : i32
    %24 = vector.broadcast %c0_i32_14 : i32 to vector<64x1xi32>
    %25 = arith.maxsi %24, %23 : vector<64x1xi32>
    %26 = vector.broadcast %c64_i32 : i32 to vector<64x1xi32>
    %27 = arith.minsi %26, %25 : vector<64x1xi32>
    %c65_i32 = arith.constant 65 : i32
    %28 = vector.broadcast %c65_i32 : i32 to vector<64x1xi32>
    %29 = arith.addi %28, %17 : vector<64x1xi32>
    %30 = tpu.iota {dimensions = array<i32: 1>} : vector<64x67xi32>
    %31 = vector.broadcast %27 : vector<64x1xi32> to vector<64x67xi32>
    %32 = arith.cmpi eq, %30, %31 : vector<64x67xi32>
    %33 = vector.broadcast %29 : vector<64x1xi32> to vector<64x67xi32>
    %34 = arith.cmpi eq, %30, %33 : vector<64x67xi32>
    %35 = arith.ori %32, %34 : vector<64x67xi1>
    %36 = arith.extui %35 : vector<64x67xi1> to vector<64x67xi32>
    %37 = arith.sitofp %36 : vector<64x67xi32> to vector<64x67xf32>
    %c0_15 = arith.constant 0 : index
    %c0_16 = arith.constant 0 : index
    %38 = vector.load %arg9[%c0_15, %c0_16] : memref<67x128xf32, #tpu.memory_space<vmem>>, vector<67x128xf32>
    %cst_17 = arith.constant dense<0.000000e+00> : vector<64x128xf32>
    %39 = tpu.matmul %37, %38, %cst_17 {dimension_numbers = #tpu.dot_dimension_numbers<[1], [0], [0], [1], [0, 0, 1, 1], [], []>} : vector<64x67xf32>, vector<67x128xf32>, vector<64x128xf32> -> vector<64x128xf32>
    %40 = vector.shape_cast %6 : vector<8x128xf32> to vector<1x8x128xf32>
    %41 = vector.shape_cast %40 : vector<1x8x128xf32> to vector<1x8x128xf32>
    %42 = vector.broadcast %41 : vector<1x8x128xf32> to vector<8x8x128xf32>
    %43 = vector.shape_cast %42 : vector<8x8x128xf32> to vector<64x128xf32>
    %44 = vector.shape_cast %13 : vector<8x128xf32> to vector<8x1x128xf32>
    %45 = vector.shape_cast %44 : vector<8x1x128xf32> to vector<8x1x128xf32>
    %46 = vector.broadcast %45 : vector<8x1x128xf32> to vector<8x8x128xf32>
    %47 = vector.shape_cast %46 : vector<8x8x128xf32> to vector<64x128xf32>
    %48 = arith.addf %43, %47 : vector<64x128xf32>
    %49 = arith.addf %48, %39 : vector<64x128xf32>
    %c0_18 = arith.constant 0 : index
    %c0_19 = arith.constant 0 : index
    %c0_20 = arith.constant 0 : index
    %50 = vector.load %arg11[%c0_18, %c0_19, %c0_20] : memref<1x64x128xf32, #tpu.memory_space<vmem>>, vector<1x64x128xf32>
    %51 = vector.shape_cast %50 : vector<1x64x128xf32> to vector<64x128xf32>
    %52 = vector.shape_cast %49 : vector<64x128xf32> to vector<1x64x128xf32>
    tpu.vector_store %arg11[%c0_18, %c0_19, %c0_20], %52 {strides = array<i32>} : memref<1x64x128xf32, #tpu.memory_space<vmem>>, vector<1x64x128xf32>,
    return
  }
  func.func @transform_0(%arg0: i32, %arg1: i32) -> (i32, i32, i32) {
    %c0_i32 = arith.constant 0 : i32
    %c0_i32_0 = arith.constant 0 : i32
    %c0_i32_1 = arith.constant 0 : i32
    return %arg0, %c0_i32, %c0_i32_0 : i32, i32, i32
  }
  func.func @transform_1(%arg0: i32, %arg1: i32) -> (i32, i32, i32) {
    %c0_i32 = arith.constant 0 : i32
    %c0_i32_0 = arith.constant 0 : i32
    %c0_i32_1 = arith.constant 0 : i32
    return %arg0, %c0_i32, %c0_i32_0 : i32, i32, i32
  }
  func.func @transform_2(%arg0: i32, %arg1: i32) -> (i32, i32, i32) {
    %c0_i32 = arith.constant 0 : i32
    %c0_i32_0 = arith.constant 0 : i32
    return %arg0, %arg1, %c0_i32 : i32, i32, i32
  }
  func.func @transform_3(%arg0: i32, %arg1: i32) -> (i32, i32, i32) {
    %c0_i32 = arith.constant 0 : i32
    %c0_i32_0 = arith.constant 0 : i32
    return %arg0, %arg1, %c0_i32 : i32, i32, i32
  }
  func.func @transform_4(%arg0: i32, %arg1: i32) -> (i32, i32) {
    %c0_i32 = arith.constant 0 : i32
    %c0_i32_0 = arith.constant 0 : i32
    %c0_i32_1 = arith.constant 0 : i32
    return %c0_i32, %c0_i32_0 : i32, i32
  }
  func.func @transform_5(%arg0: i32, %arg1: i32) -> (i32, i32) {
    %c0_i32 = arith.constant 0 : i32
    %c0_i32_0 = arith.constant 0 : i32
    %c0_i32_1 = arith.constant 0 : i32
    return %c0_i32, %c0_i32_0 : i32, i32
  }
  func.func @transform_6(%arg0: i32, %arg1: i32) -> (i32, i32) {
    %c0_i32 = arith.constant 0 : i32
    %c0_i32_0 = arith.constant 0 : i32
    %c0_i32_1 = arith.constant 0 : i32
    return %c0_i32, %c0_i32_0 : i32, i32
  }
  func.func @transform_7(%arg0: i32, %arg1: i32) -> (i32, i32) {
    %c0_i32 = arith.constant 0 : i32
    %c0_i32_0 = arith.constant 0 : i32
    %c0_i32_1 = arith.constant 0 : i32
    return %c0_i32, %c0_i32_0 : i32, i32
  }
  func.func @transform_8(%arg0: i32, %arg1: i32) -> (i32, i32, i32) {
    %c0_i32 = arith.constant 0 : i32
    %c0_i32_0 = arith.constant 0 : i32
    %c0_i32_1 = arith.constant 0 : i32
    return %arg0, %c0_i32, %c0_i32_0 : i32, i32, i32
  }
  func.func @transform_9(%arg0: i32, %arg1: i32) -> (i32, i32, i32) {
    %c0_i32 = arith.constant 0 : i32
    %c0_i32_0 = arith.constant 0 : i32
    return %arg0, %arg1, %c0_i32 : i32, i32, i32
  }
  func.func @transform_10(%arg0: i32, %arg1: i32) -> (i32, i32, i32) {
    %c0_i32 = arith.constant 0 : i32
    %c0_i32_0 = arith.constant 0 : i32
    %c0_i32_1 = arith.constant 0 : i32
    return %arg0, %c0_i32, %c0_i32_0 : i32, i32, i32
  }
}

</mosaic_0001>

<llo_original>
// kernel: tpu_custom_call.1
$region0: #{tpu_custom_call.1}
  #allocation0 [shape = 'u32[]', space=smem, size = 0x4, offset = 0x4, fixed_abs, tag = 'smem constant byte address 0x4 - core index']
  #allocation1 [shape = 'u32[144,128]{1,0:T(1,128)}', space=vmem, size = 0x12000, scoped, tag = 'internal scratch']
  %s0 = inlined_call_operand.vmem [shape: f32[2,32,24], index: 0, kind: input, shape index: {}]
  %s1 = inlined_call_operand.vmem [shape: f32[2,8,10], index: 1, kind: input, shape index: {}]
  %s2 = inlined_call_operand.vmem [shape: s32[2,64,1], index: 2, kind: input, shape index: {}]
  %s3 = inlined_call_operand.vmem [shape: s32[2,64,1], index: 3, kind: input, shape index: {}]
  %s4 = inlined_call_operand.vmem [shape: f32[24,256], index: 4, kind: input, shape index: {}]
  %s5 = inlined_call_operand.vmem [shape: f32[1,256], index: 5, kind: input, shape index: {}]
  %s6 = inlined_call_operand.vmem [shape: f32[10,544], index: 6, kind: input, shape index: {}]
  %s7 = inlined_call_operand.vmem [shape: f32[67,128], index: 7, kind: input, shape index: {}]
  %s8 = inlined_call_operand.hbm [shape: f32[2,32,256], index: 8, kind: output, shape index: {0}]
  %s9 = inlined_call_operand.hbm [shape: f32[2,64,128], index: 9, kind: output, shape index: {1}]
  %s10 = inlined_call_operand.hbm [shape: f32[2,8,32], index: 10, kind: output, shape index: {2}]
  %11 = xla_tuple %s8, %s9, %s10
  %s12 = sld [smem:[#allocation0]]
  $region85: #{tpu_custom_call.1} parent=0
    _
  %s14 = ssub.s32 1, %s12
  %s15 = scalar_select 0, %s14, %s12
  $region1: #{tpu_custom_call.1} parent=0
    #allocation2 [shape = 'u8[65536]{0}', space=vmem, size = 0x10000, scoped, tag = 'output window, operand 0']
    #allocation3 [shape = 's32[2]{0}', space=sflag, size = 0x8, scoped, tag = 'scoped memory for tpu_custom_call.1']
    #allocation4 [shape = 'u8[65536]{0}', space=vmem, size = 0x10000, scoped, tag = 'output window, operand 1']
    #allocation5 [shape = 's32[2]{0}', space=sflag, size = 0x8, scoped, tag = 'scoped memory for tpu_custom_call.1']
    #allocation6 [shape = 'u8[8192]{0}', space=vmem, size = 0x2000, scoped, tag = 'output window, operand 2']
    %16 = vsyncpa [#allocation3], 0
    %s17 = scalar_lea.sflag [#allocation3], 1
    %18 = vsyncpa %s17, 0
    %19 = vsyncpa [#allocation5], 0
    %s20 = scalar_lea.sflag [#allocation5], 1
    %21 = vsyncpa %s20, 0
    loop: start=0, step=1, limit=4
    $region2: #{tpu_custom_call.1} parent=1 // loop_pre_header
      _
    $region3: #{tpu_custom_call.1} parent=1 // loop_header
      %s23 = sphi 0, %s27
      %p24 = scmp.ge.s32.totalorder %s23, 4
      %s30 = sphi 0, %s42
      %s31 = sphi 0, %s38
      %s32 = sphi 0, %s30
      %s33 = sphi 0, %s31
      %s34 = sphi 0, %s32
      %s35 = sphi 0, %s33
      %s45 = sphi 0, %s47
      %s48 = sphi 0, %s45
      %s49 = sphi 0, %s48
      %s65 = sphi 0, %s49
      %s71 = sphi 0, %s73
      %s74 = sphi 0, %s71
      %s75 = sphi 0, %s74
      %s91 = sphi 0, %s75
      %s99 = sphi 0, %s101
      %s102 = sphi 0, %s99
      %s103 = sphi 0, %s102
      %s119 = sphi 0, %s103
      %s127 = sphi 0, %s129
      %s130 = sphi 0, %s127
      %s131 = sphi 0, %s130
      %s147 = sphi 0, %s131
      %s151 = sphi 0, %s151
      %s153 = sphi 0, %s151
      %s154 = sphi 0, %s153
      %s168 = sphi 0, %s154
      %s172 = sphi 0, %s172
      %s174 = sphi 0, %s172
      %s175 = sphi 0, %s174
      %s189 = sphi 0, %s175
      %s193 = sphi 0, %s193
      %s195 = sphi 0, %s193
      %s196 = sphi 0, %s195
      %s210 = sphi 0, %s196
      %s214 = sphi 0, %s214
      %s216 = sphi 0, %s214
      %s217 = sphi 0, %s216
      %s231 = sphi 0, %s217
      %s237 = sphi 0, %s239
      %s240 = sphi 0, %s237
      %s241 = sphi 0, %s240
      %s257 = sphi 0, %s241
      %s265 = sphi 0, %s267
      %s268 = sphi 0, %s265
      %s269 = sphi 0, %s268
      %s285 = sphi 0, %s269
      %s291 = sphi 0, %s293
      %s294 = sphi 0, %s291
      %s295 = sphi 0, %s294
      %s311 = sphi 0, %s295
    $region4: #{tpu_custom_call.1} parent=1 // loop_header_branch
      %26 = sbr.rel (%p24) target = $region8
    $region5: #{tpu_custom_call.1} parent=1 // loop_body
      %s28 = ssub.s32 %s23, 1
      %s29 = ssub.s32 %s23, 2
      %s36 = sadd.s32 1, %s31
      %p37 = scmp.ge.s32.totalorder %s36, 1
      %s38 = scalar_select %p37, 0, %s36
      %s39 = sadd.s32 1, %s30
      %s40 = scalar_select %p37, %s39, %s30
      %p41 = scmp.ge.s32.totalorder %s40, 2
      %s42 = scalar_select %p41, 0, %s40
      %s43 = ssub.s32 %s30, %s42
      %p44 = scmp.eq.s32.totalorder %s43, 0
      %s46 = sadd.s32 %s45, 1
      %s47 = scalar_select %p44, %s45, %s46
      %p50 = pneg %p44
      %p51 = scmp.eq.s32.totalorder %s23, 1
      %p52 = por %p50, %p51
      %p53 = scmp.ne.s32.totalorder %s45, %s48
      %p54 = scmp.eq.s32.totalorder %s23, 0
      %p55 = por %p53, %p54
      %p56 = scmp.ne.s32.totalorder %s45, %s48
      %p57 = scmp.eq.s32.totalorder %s28, 1
      %p58 = por %p56, %p57
      %p59 = scmp.ne.s32.totalorder %s48, %s49
      %p60 = scmp.eq.s32.totalorder %s28, 0
      %p61 = por %p59, %p60
      %p62 = scmp.ne.s32.totalorder %s48, %s49
      %p63 = scmp.eq.s32.totalorder %s29, 1
      %p64 = por %p62, %p63
      %p66 = scmp.ne.s32.totalorder %s49, %s65
      %p67 = scmp.eq.s32.totalorder %s29, 0
      %p68 = por %p66, %p67
      %s69 = ssub.s32 %s30, %s42
      %p70 = scmp.eq.s32.totalorder %s69, 0
      %s72 = sadd.s32 %s71, 1
      %s73 = scalar_select %p70, %s71, %s72
      %p76 = pneg %p70
      %p77 = scmp.eq.s32.totalorder %s23, 1
      %p78 = por %p76, %p77
      %p79 = scmp.ne.s32.totalorder %s71, %s74
      %p80 = scmp.eq.s32.totalorder %s23, 0
      %p81 = por %p79, %p80
      %p82 = scmp.ne.s32.totalorder %s71, %s74
      %p83 = scmp.eq.s32.totalorder %s28, 1
      %p84 = por %p82, %p83
      %p85 = scmp.ne.s32.totalorder %s74, %s75
      %p86 = scmp.eq.s32.totalorder %s28, 0
      %p87 = por %p85, %p86
      %p88 = scmp.ne.s32.totalorder %s74, %s75
      %p89 = scmp.eq.s32.totalorder %s29, 1
      %p90 = por %p88, %p89
      %p92 = scmp.ne.s32.totalorder %s75, %s91
      %p93 = scmp.eq.s32.totalorder %s29, 0
      %p94 = por %p92, %p93
      %s95 = ssub.s32 %s30, %s42
      %s96 = ssub.s32 %s31, %s38
      %s97 = sor.u32 %s95, %s96
      %p98 = scmp.eq.s32.totalorder %s97, 0
      %s100 = sadd.s32 %s99, 1
      %s101 = scalar_select %p98, %s99, %s100
      %p104 = pneg %p98
      %p105 = scmp.eq.s32.totalorder %s23, 1
      %p106 = por %p104, %p105
      %p107 = scmp.ne.s32.totalorder %s99, %s102
      %p108 = scmp.eq.s32.totalorder %s23, 0
      %p109 = por %p107, %p108
      %p110 = scmp.ne.s32.totalorder %s99, %s102
      %p111 = scmp.eq.s32.totalorder %s28, 1
      %p112 = por %p110, %p111
      %p113 = scmp.ne.s32.totalorder %s102, %s103
      %p114 = scmp.eq.s32.totalorder %s28, 0
      %p115 = por %p113, %p114
      %p116 = scmp.ne.s32.totalorder %s102, %s103
      %p117 = scmp.eq.s32.totalorder %s29, 1
      %p118 = por %p116, %p117
      %p120 = scmp.ne.s32.totalorder %s103, %s119
      %p121 = scmp.eq.s32.totalorder %s29, 0
      %p122 = por %p120, %p121
      %s123 = ssub.s32 %s30, %s42
      %s124 = ssub.s32 %s31, %s38
      %s125 = sor.u32 %s123, %s124
      %p126 = scmp.eq.s32.totalorder %s125, 0
      %s128 = sadd.s32 %s127, 1
      %s129 = scalar_select %p126, %s127, %s128
      %p132 = pneg %p126
      %p133 = scmp.eq.s32.totalorder %s23, 1
      %p134 = por %p132, %p133
      %p135 = scmp.ne.s32.totalorder %s127, %s130
      %p136 = scmp.eq.s32.totalorder %s23, 0
      %p137 = por %p135, %p136
      %p138 = scmp.ne.s32.totalorder %s127, %s130
      %p139 = scmp.eq.s32.totalorder %s28, 1
      %p140 = por %p138, %p139
      %p141 = scmp.ne.s32.totalorder %s130, %s131
      %p142 = scmp.eq.s32.totalorder %s28, 0
      %p143 = por %p141, %p142
      %p144 = scmp.ne.s32.totalorder %s130, %s131
      %p145 = scmp.eq.s32.totalorder %s29, 1
      %p146 = por %p144, %p145
      %p148 = scmp.ne.s32.totalorder %s131, %s147
      %p149 = scmp.eq.s32.totalorder %s29, 0
      %p150 = por %p148, %p149
      %s152 = sadd.s32 %s151, 1
      %p155 = scmp.eq.s32.totalorder %s23, 1
      %p156 = scmp.ne.s32.totalorder %s151, %s153
      %p157 = scmp.eq.s32.totalorder %s23, 0
      %p158 = por %p156, %p157
      %p159 = scmp.ne.s32.totalorder %s151, %s153
      %p160 = scmp.eq.s32.totalorder %s28, 1
      %p161 = por %p159, %p160
      %p162 = scmp.ne.s32.totalorder %s153, %s154
      %p163 = scmp.eq.s32.totalorder %s28, 0
      %p164 = por %p162, %p163
      %p165 = scmp.ne.s32.totalorder %s153, %s154
      %p166 = scmp.eq.s32.totalorder %s29, 1
      %p167 = por %p165, %p166
      %p169 = scmp.ne.s32.totalorder %s154, %s168
      %p170 = scmp.eq.s32.totalorder %s29, 0
      %p171 = por %p169, %p170
      %s173 = sadd.s32 %s172, 1
      %p176 = scmp.eq.s32.totalorder %s23, 1
      %p177 = scmp.ne.s32.totalorder %s172, %s174
      %p178 = scmp.eq.s32.totalorder %s23, 0
      %p179 = por %p177, %p178
      %p180 = scmp.ne.s32.totalorder %s172, %s174
      %p181 = scmp.eq.s32.totalorder %s28, 1
      %p182 = por %p180, %p181
      %p183 = scmp.ne.s32.totalorder %s174, %s175
      %p184 = scmp.eq.s32.totalorder %s28, 0
      %p185 = por %p183, %p184
      %p186 = scmp.ne.s32.totalorder %s174, %s175
      %p187 = scmp.eq.s32.totalorder %s29, 1
      %p188 = por %p186, %p187
      %p190 = scmp.ne.s32.totalorder %s175, %s189
      %p191 = scmp.eq.s32.totalorder %s29, 0
      %p192 = por %p190, %p191
      %s194 = sadd.s32 %s193, 1
      %p197 = scmp.eq.s32.totalorder %s23, 1
      %p198 = scmp.ne.s32.totalorder %s193, %s195
      %p199 = scmp.eq.s32.totalorder %s23, 0
      %p200 = por %p198, %p199
      %p201 = scmp.ne.s32.totalorder %s193, %s195
      %p202 = scmp.eq.s32.totalorder %s28, 1
      %p203 = por %p201, %p202
      %p204 = scmp.ne.s32.totalorder %s195, %s196
      %p205 = scmp.eq.s32.totalorder %s28, 0
      %p206 = por %p204, %p205
      %p207 = scmp.ne.s32.totalorder %s195, %s196
      %p208 = scmp.eq.s32.totalorder %s29, 1
      %p209 = por %p207, %p208
      %p211 = scmp.ne.s32.totalorder %s196, %s210
      %p212 = scmp.eq.s32.totalorder %s29, 0
      %p213 = por %p211, %p212
      %s215 = sadd.s32 %s214, 1
      %p218 = scmp.eq.s32.totalorder %s23, 1
      %p219 = scmp.ne.s32.totalorder %s214, %s216
      %p220 = scmp.eq.s32.totalorder %s23, 0
      %p221 = por %p219, %p220
      %p222 = scmp.ne.s32.totalorder %s214, %s216
      %p223 = scmp.eq.s32.totalorder %s28, 1
      %p224 = por %p222, %p223
      %p225 = scmp.ne.s32.totalorder %s216, %s217
      %p226 = scmp.eq.s32.totalorder %s28, 0
      %p227 = por %p225, %p226
      %p228 = scmp.ne.s32.totalorder %s216, %s217
      %p229 = scmp.eq.s32.totalorder %s29, 1
      %p230 = por %p228, %p229
      %p232 = scmp.ne.s32.totalorder %s217, %s231
      %p233 = scmp.eq.s32.totalorder %s29, 0
      %p234 = por %p232, %p233
      %s235 = ssub.s32 %s30, %s42
      %p236 = scmp.eq.s32.totalorder %s235, 0
      %s238 = sadd.s32 %s237, 1
      %s239 = scalar_select %p236, %s237, %s238
      %p242 = pneg %p236
      %p243 = scmp.eq.s32.totalorder %s23, 1
      %p244 = por %p242, %p243
      %p245 = scmp.ne.s32.totalorder %s237, %s240
      %p246 = scmp.eq.s32.totalorder %s23, 0
      %p247 = por %p245, %p246
      %p248 = scmp.ne.s32.totalorder %s237, %s240
      %p249 = scmp.eq.s32.totalorder %s28, 1
      %p250 = por %p248, %p249
      %p251 = scmp.ne.s32.totalorder %s240, %s241
      %p252 = scmp.eq.s32.totalorder %s28, 0
      %p253 = por %p251, %p252
      %p254 = scmp.ne.s32.totalorder %s240, %s241
      %p255 = scmp.eq.s32.totalorder %s29, 1
      %p256 = por %p254, %p255
      %p258 = scmp.ne.s32.totalorder %s241, %s257
      %p259 = scmp.eq.s32.totalorder %s29, 0
      %p260 = por %p258, %p259
      %s261 = ssub.s32 %s30, %s42
      %s262 = ssub.s32 %s31, %s38
      %s263 = sor.u32 %s261, %s262
      %p264 = scmp.eq.s32.totalorder %s263, 0
      %s266 = sadd.s32 %s265, 1
      %s267 = scalar_select %p264, %s265, %s266
      %p270 = pneg %p264
      %p271 = scmp.eq.s32.totalorder %s23, 1
      %p272 = por %p270, %p271
      %p273 = scmp.ne.s32.totalorder %s265, %s268
      %p274 = scmp.eq.s32.totalorder %s23, 0
      %p275 = por %p273, %p274
      %p276 = scmp.ne.s32.totalorder %s265, %s268
      %p277 = scmp.eq.s32.totalorder %s28, 1
      %p278 = por %p276, %p277
      %p279 = scmp.ne.s32.totalorder %s268, %s269
      %p280 = scmp.eq.s32.totalorder %s28, 0
      %p281 = por %p279, %p280
      %p282 = scmp.ne.s32.totalorder %s268, %s269
      %p283 = scmp.eq.s32.totalorder %s29, 1
      %p284 = por %p282, %p283
      %p286 = scmp.ne.s32.totalorder %s269, %s285
      %p287 = scmp.eq.s32.totalorder %s29, 0
      %p288 = por %p286, %p287
      %s289 = ssub.s32 %s30, %s42
      %p290 = scmp.eq.s32.totalorder %s289, 0
      %s292 = sadd.s32 %s291, 1
      %s293 = scalar_select %p290, %s291, %s292
      %p296 = pneg %p290
      %p297 = scmp.eq.s32.totalorder %s23, 1
      %p298 = por %p296, %p297
      %p299 = scmp.ne.s32.totalorder %s291, %s294
      %p300 = scmp.eq.s32.totalorder %s23, 0
      %p301 = por %p299, %p300
      %p302 = scmp.ne.s32.totalorder %s291, %s294
      %p303 = scmp.eq.s32.totalorder %s28, 1
      %p304 = por %p302, %p303
      %p305 = scmp.ne.s32.totalorder %s294, %s295
      %p306 = scmp.eq.s32.totalorder %s28, 0
      %p307 = por %p305, %p306
      %p308 = scmp.ne.s32.totalorder %s294, %s295
      %p309 = scmp.eq.s32.totalorder %s29, 1
      %p310 = por %p308, %p309
      %p312 = scmp.ne.s32.totalorder %s295, %s311
      %p313 = scmp.eq.s32.totalorder %s29, 0
      %p314 = por %p312, %p313
      %p315 = scmp.le.s32.totalorder 1, %s23
      %p316 = scmp.lt.s32.totalorder %s23, 3
      %p317 = pnand %p315, %p316
      %p318 = pneg %p317
      // Predicated region
      $region9: #{tpu_custom_call.1} parent=5 // pred_check
        _
      $region10: #{tpu_custom_call.1} parent=5 // pred_check_branch
        %320 = sbr.rel (%p317) target = $region12
      $region11: #{tpu_custom_call.1} parent=5 // pred_region
        %s321 = ssub.s32 %s23, 1
        // Predicated region
        $region13: #{tpu_custom_call.1} parent=11 // pred_check
          %p322 = pneg %p164
        $region14: #{tpu_custom_call.1} parent=11 // pred_check_branch
          %324 = sbr.rel (%p322) target = $region16
        $region15: #{tpu_custom_call.1} parent=11 // pred_region
          _
        $region16: #{tpu_custom_call.1} parent=11 // pred_fallthru
          _
        // Predicated region
        $region17: #{tpu_custom_call.1} parent=11 // pred_check
          %p325 = pneg %p185
        $region18: #{tpu_custom_call.1} parent=11 // pred_check_branch
          %327 = sbr.rel (%p325) target = $region20
        $region19: #{tpu_custom_call.1} parent=11 // pred_region
          _
        $region20: #{tpu_custom_call.1} parent=11 // pred_fallthru
          _
        // Predicated region
        $region21: #{tpu_custom_call.1} parent=11 // pred_check
          %p328 = pneg %p206
        $region22: #{tpu_custom_call.1} parent=11 // pred_check_branch
          %330 = sbr.rel (%p328) target = $region24
        $region23: #{tpu_custom_call.1} parent=11 // pred_region
          _
        $region24: #{tpu_custom_call.1} parent=11 // pred_fallthru
          _
        // Predicated region
        $region25: #{tpu_custom_call.1} parent=11 // pred_check
          %p331 = pneg %p227
        $region26: #{tpu_custom_call.1} parent=11 // pred_check_branch
          %333 = sbr.rel (%p331) target = $region28
        $region27: #{tpu_custom_call.1} parent=11 // pred_region
          _
        $region28: #{tpu_custom_call.1} parent=11 // pred_fallthru
          _
      $region12: #{tpu_custom_call.1} parent=5 // pred_fallthru
        _
      %p334 = scmp.lt.s32.totalorder %s23, 2
      // Predicated region
      $region29: #{tpu_custom_call.1} parent=5 // pred_check
        %p335 = pneg %p334
      $region30: #{tpu_custom_call.1} parent=5 // pred_check_branch
        %337 = sbr.rel (%p335) target = $region32
      $region31: #{tpu_custom_call.1} parent=5 // pred_region
        // Predicated region
        $region33: #{tpu_custom_call.1} parent=31 // pred_check
          %p338 = pneg %p55
        $region34: #{tpu_custom_call.1} parent=31 // pred_check_branch
          %340 = sbr.rel (%p338) target = $region36
        $region35: #{tpu_custom_call.1} parent=31 // pred_region
          %p341 = scmp.lt.s32.totalorder %s30, 1
          %s342 = scalar_select %p341, %s30, 1
          %s343 = smul.addr %s342, 4
          %s344 = smul.addr %s343, 8
          %s345 = scalar_lea.vmem %s0, %s344
        $region36: #{tpu_custom_call.1} parent=31 // pred_fallthru
          _
        // Predicated region
        $region37: #{tpu_custom_call.1} parent=31 // pred_check
          %p346 = pneg %p81
        $region38: #{tpu_custom_call.1} parent=31 // pred_check_branch
          %348 = sbr.rel (%p346) target = $region40
        $region39: #{tpu_custom_call.1} parent=31 // pred_region
          %p349 = scmp.lt.s32.totalorder %s30, 1
          %s350 = scalar_select %p349, %s30, 1
          %s351 = smul.addr %s350, 8
          %s352 = scalar_lea.vmem %s1, %s351
        $region40: #{tpu_custom_call.1} parent=31 // pred_fallthru
          _
        // Predicated region
        $region41: #{tpu_custom_call.1} parent=31 // pred_check
          %p353 = pneg %p109
        $region42: #{tpu_custom_call.1} parent=31 // pred_check_branch
          %355 = sbr.rel (%p353) target = $region44
        $region43: #{tpu_custom_call.1} parent=31 // pred_region
          %s356 = smul.u32 8, %s31
          %p357 = scmp.lt.s32.totalorder %s30, 1
          %s358 = scalar_select %p357, %s30, 1
          %p359 = scmp.lt.s32.totalorder %s356, 7
          %s360 = scalar_select %p359, %s356, 7
          %s361 = smul.addr %s358, 8
          %s362 = sadd.s32 %s360, %s361
          %s363 = smul.addr %s362, 8
          %s364 = scalar_lea.vmem %s2, %s363
          %s365 = smul.u32 8, %s31
        $region44: #{tpu_custom_call.1} parent=31 // pred_fallthru
          _
        // Predicated region
        $region45: #{tpu_custom_call.1} parent=31 // pred_check
          %p366 = pneg %p137
        $region46: #{tpu_custom_call.1} parent=31 // pred_check_branch
          %368 = sbr.rel (%p366) target = $region48
        $region47: #{tpu_custom_call.1} parent=31 // pred_region
          %s369 = smul.u32 8, %s31
          %p370 = scmp.lt.s32.totalorder %s30, 1
          %s371 = scalar_select %p370, %s30, 1
          %p372 = scmp.lt.s32.totalorder %s369, 7
          %s373 = scalar_select %p372, %s369, 7
          %s374 = smul.addr %s371, 8
          %s375 = sadd.s32 %s373, %s374
          %s376 = smul.addr %s375, 8
          %s377 = scalar_lea.vmem %s3, %s376
          %s378 = smul.u32 8, %s31
        $region48: #{tpu_custom_call.1} parent=31 // pred_fallthru
          _
      $region32: #{tpu_custom_call.1} parent=5 // pred_fallthru
        _
      %p379 = scmp.le.s32.totalorder 1, %s23
      %p380 = scmp.lt.s32.totalorder %s23, 3
      %p381 = pnand %p379, %p380
      %p382 = pneg %p381
      // Predicated region
      $region49: #{tpu_custom_call.1} parent=5 // pred_check
        _
      $region50: #{tpu_custom_call.1} parent=5 // pred_check_branch
        %384 = sbr.rel (%p381) target = $region52
      $region51: #{tpu_custom_call.1} parent=5 // pred_region
        %s385 = ssub.s32 %s23, 1
        %p386 = scmp.lt.s32.totalorder %s32, 1
        %s387 = scalar_select %p386, %s32, 1
        %s388 = smul.addr %s387, 4
        %s389 = smul.addr %s388, 8
        %s390 = scalar_lea.vmem %s0, %s389
        %p391 = pneg %p61
        %p392 = pneg %p58
        %p393 = scmp.lt.s32.totalorder %s32, 1
        %s394 = scalar_select %p393, %s32, 1
        %s395 = smul.addr %s394, 8
        %s396 = scalar_lea.vmem %s1, %s395
        %p397 = pneg %p87
        %p398 = pneg %p84
        %s399 = smul.u32 8, %s33
        %p400 = scmp.lt.s32.totalorder %s32, 1
        %s401 = scalar_select %p400, %s32, 1
        %p402 = scmp.lt.s32.totalorder %s399, 7
        %s403 = scalar_select %p402, %s399, 7
        %s404 = smul.addr %s401, 8
        %s405 = sadd.s32 %s403, %s404
        %s406 = smul.addr %s405, 8
        %s407 = scalar_lea.vmem %s2, %s406
        %p408 = pneg %p115
        %p409 = pneg %p112
        %s410 = smul.u32 8, %s33
        %p411 = scmp.lt.s32.totalorder %s32, 1
        %s412 = scalar_select %p411, %s32, 1
        %p413 = scmp.lt.s32.totalorder %s410, 7
        %s414 = scalar_select %p413, %s410, 7
        %s415 = smul.addr %s412, 8
        %s416 = sadd.s32 %s414, %s415
        %s417 = smul.addr %s416, 8
        %s418 = scalar_lea.vmem %s3, %s417
        %p419 = pneg %p143
        %p420 = pneg %p140
        %p421 = pneg %p164
        %p422 = pneg %p161
        %p423 = pneg %p185
        %p424 = pneg %p182
        %p425 = pneg %p206
        %p426 = pneg %p203
        %p427 = pneg %p227
        %p428 = pneg %p224
        %p429 = pneg %p253
        %p430 = pneg %p250
        %s431 = sand.u32 %s240, 1
        %s432 = scalar_lea.sflag [#allocation3], %s431
        %s433 = sand.u32 %s240, 1
        %s434 = smul.addr %s433, 64
        %s435 = scalar_lea.vmem [#allocation2], %s434
        %p436 = pneg %p281
        %p437 = pneg %p278
        %s438 = sand.u32 %s28, 1
        %s439 = scalar_lea.sflag [#allocation5], %s438
        %s440 = sand.u32 %s268, 1
        %s441 = smul.addr %s440, 64
        %s442 = scalar_lea.vmem [#allocation4], %s441
        %p443 = pneg %p307
        %p444 = pneg %p304
        %s445 = sand.u32 %s28, 1
        %s446 = scalar_lea.sflag [#allocation5], %s445
        %s447 = sand.u32 %s294, 1
        %s448 = smul.addr %s447, 8
        %s449 = scalar_lea.vmem [#allocation6], %s448
        %p450 = scmp.lt.s32.totalorder %s32, 1
        %s451 = scalar_select %p450, %s32, 1
        %s452 = smul.addr %s451, 4
        %s453 = smul.addr %s452, 8
        %s454 = scalar_lea.vmem %s0, %s453
        %p455 = scmp.lt.s32.totalorder %s32, 1
        %s456 = scalar_select %p455, %s32, 1
        %s457 = smul.addr %s456, 8
        %s458 = scalar_lea.vmem %s1, %s457
        %s459 = smul.u32 8, %s33
        %p460 = scmp.lt.s32.totalorder %s32, 1
        %s461 = scalar_select %p460, %s32, 1
        %p462 = scmp.lt.s32.totalorder %s459, 7
        %s463 = scalar_select %p462, %s459, 7
        %s464 = smul.addr %s461, 8
        %s465 = sadd.s32 %s463, %s464
        %s466 = smul.addr %s465, 8
        %s467 = scalar_lea.vmem %s2, %s466
        %s468 = smul.u32 8, %s33
        %s469 = smul.u32 8, %s33
        %p470 = scmp.lt.s32.totalorder %s32, 1
        %s471 = scalar_select %p470, %s32, 1
        %p472 = scmp.lt.s32.totalorder %s469, 7
        %s473 = scalar_select %p472, %s469, 7
        %s474 = smul.addr %s471, 8
        %s475 = sadd.s32 %s473, %s474
        %s476 = smul.addr %s475, 8
        %s477 = scalar_lea.vmem %s3, %s476
        %s478 = smul.u32 8, %s33
        %s479 = smul.u32 8, %s33
        %v480 = vld [vmem:[%s458] sm:$0xff]
        %p481 = scmp.eq.s32.totalorder %s33, 0
        // Predicated region
        $region53: #{tpu_custom_call.1} parent=51 // pred_check
          %p482 = pneg %p481
        $region54: #{tpu_custom_call.1} parent=51 // pred_check_branch
          %484 = sbr.rel (%p482) target = $region56
        $region55: #{tpu_custom_call.1} parent=51 // pred_region
          %v485 = vld [vmem:[%s6] sm:$0xff]
          %v486 = vld [vmem:[%s6 + $0x8] sm:$0xff]
          %v487 = vld [vmem:[%s6 + $0x20] sm:$0xff]
          %v488 = vld [vmem:[%s6 + $0x28] sm:$0x3]
          %v489 = vld [vmem:[%s6 + $0x30] sm:$0x3]
          %v490 = vld [vmem:[%s6 + $0x48] sm:$0x3]
          %vm491 = vcmask 80896
          %v493 = vsel %vm491, %v480, 0
          %vm495 = vcmask 1041408
          %v497 = vsel %vm495, %v488, 0
          %v500 = vsel %vm495, %v489, 0
          %v503 = vsel %vm495, %v490, 0
          %505 = vmatprep.subr.mxu0 %v486
          %506 = vmatpush1.msra.mxu0 %v485
          %507 = vmatprep.subr.mxu0 %v500
          %508 = vmatpush1.msra.mxu0 %v497
          %509 = vmatprep.subr.mxu0 0.0
          %510 = vmatpush1.msra.mxu0 0.0
          %511 = vmatprep.subr.mxu0 0.0
          %512 = vmatpush1.msra.mxu0 0.0
          %513 = vmatprep.subr.mxu0 0.0
          %514 = vmatpush1.msra.mxu0 0.0
          %515 = vmatprep.subr.mxu0 0.0
          %516 = vmatpush1.msra.mxu0 0.0
          %517 = vmatprep.subr.mxu0 0.0
          %518 = vmatpush1.msra.mxu0 0.0
          %519 = vmatprep.subr.mxu0 0.0
          %520 = vmatpush1.msra.mxu0 0.0
          %521 = vmatprep.subr.mxu0 0.0
          %522 = vmatpush1.msra.mxu0 0.0
          %523 = vmatprep.subr.mxu0 0.0
          %524 = vmatpush1.msra.mxu0 0.0
          %525 = vmatprep.subr.mxu0 0.0
          %526 = vmatpush1.msra.mxu0 0.0
          %527 = vmatprep.subr.mxu0 0.0
          %528 = vmatpush1.msra.mxu0 0.0
          %529 = vmatprep.subr.mxu0 0.0
          %530 = vmatpush1.msra.mxu0 0.0
          %531 = vmatprep.subr.mxu0 0.0
          %532 = vmatpush1.msra.mxu0 0.0
          %533 = vmatprep.subr.mxu0 0.0
          %534 = vmatpush1.msra.mxu0 0.0
          %535 = vmatprep.subr.mxu0 0.0
          %536 = vmatpush1.msra.mxu0 0.0
          %537 = vmatprep.subr.mxu0 0.0
          %538 = vmatpush1.msra.mxu0 0.0
          %539 = vmatprep.subr.mxu0 0.0
          %540 = vmatpush1.msra.mxu0 0.0
          %541 = vmatprep.subr.mxu0 0.0
          %542 = vmatpush1.msra.mxu0 0.0
          %543 = vmatprep.subr.mxu0 0.0
          %544 = vmatpush1.msra.mxu0 0.0
          %545 = vmatprep.subr.mxu0 0.0
          %546 = vmatpush1.msra.mxu0 0.0
          %547 = vmatprep.subr.mxu0 0.0
          %548 = vmatpush1.msra.mxu0 0.0
          %549 = vmatprep.subr.mxu0 0.0
          %550 = vmatpush1.msra.mxu0 0.0
          %551 = vmatprep.subr.mxu0 0.0
          %552 = vmatpush1.msra.mxu0 0.0
          %553 = vmatprep.subr.mxu0 0.0
          %554 = vmatpush1.msra.mxu0 0.0
          %555 = vmatprep.subr.mxu0 0.0
          %556 = vmatpush1.msra.mxu0 0.0
          %557 = vmatprep.subr.mxu0 0.0
          %558 = vmatpush1.msra.mxu0 0.0
          %559 = vmatprep.subr.mxu0 0.0
          %560 = vmatpush1.msra.mxu0 0.0
          %561 = vmatprep.subr.mxu0 0.0
          %562 = vmatpush1.msra.mxu0 0.0
          %563 = vmatprep.subr.mxu0 0.0
          %564 = vmatpush1.msra.mxu0 0.0
          %565 = vmatprep.subr.mxu0 0.0
          %566 = vmatpush1.msra.mxu0 0.0
          %567 = vmatprep.subr.mxu0 0.0
          %568 = vmatpush1.msra.mxu0 0.0
          %569 = vmatprep.mubr.f32.mxu0 0.0
          %570 = vmatmul.mubr.f32.gmra.mrb[0].mxu0 %v493
          %v571 = vpop.f32.mrb[0].mxu0
          %v572 = vadd.f32 0.0, %v571
          %v573 = vpop.f32.mrb[0].mxu0
          %v574 = vadd.f32 0.0, %v573
          %575 = vdwg.mxu0
          %576 = vmatprep.subr.mxu0 0.0
          %577 = vmatpush1.msra.mxu0 %v487
          %578 = vmatprep.subr.mxu0 0.0
          %579 = vmatpush1.msra.mxu0 %v503
          %580 = vmatprep.subr.mxu0 0.0
          %581 = vmatpush1.msra.mxu0 0.0
          %582 = vmatprep.subr.mxu0 0.0
          %583 = vmatpush1.msra.mxu0 0.0
          %584 = vmatprep.subr.mxu0 0.0
          %585 = vmatpush1.msra.mxu0 0.0
          %586 = vmatprep.subr.mxu0 0.0
          %587 = vmatpush1.msra.mxu0 0.0
          %588 = vmatprep.subr.mxu0 0.0
          %589 = vmatpush1.msra.mxu0 0.0
          %590 = vmatprep.subr.mxu0 0.0
          %591 = vmatpush1.msra.mxu0 0.0
          %592 = vmatprep.subr.mxu0 0.0
          %593 = vmatpush1.msra.mxu0 0.0
          %594 = vmatprep.subr.mxu0 0.0
          %595 = vmatpush1.msra.mxu0 0.0
          %596 = vmatprep.subr.mxu0 0.0
          %597 = vmatpush1.msra.mxu0 0.0
          %598 = vmatprep.subr.mxu0 0.0
          %599 = vmatpush1.msra.mxu0 0.0
          %600 = vmatprep.subr.mxu0 0.0
          %601 = vmatpush1.msra.mxu0 0.0
          %602 = vmatprep.subr.mxu0 0.0
          %603 = vmatpush1.msra.mxu0 0.0
          %604 = vmatprep.subr.mxu0 0.0
          %605 = vmatpush1.msra.mxu0 0.0
          %606 = vmatprep.subr.mxu0 0.0
          %607 = vmatpush1.msra.mxu0 0.0
          %608 = vmatprep.subr.mxu0 0.0
          %609 = vmatpush1.msra.mxu0 0.0
          %610 = vmatprep.subr.mxu0 0.0
          %611 = vmatpush1.msra.mxu0 0.0
          %612 = vmatprep.subr.mxu0 0.0
          %613 = vmatpush1.msra.mxu0 0.0
          %614 = vmatprep.subr.mxu0 0.0
          %615 = vmatpush1.msra.mxu0 0.0
          %616 = vmatprep.subr.mxu0 0.0
          %617 = vmatpush1.msra.mxu0 0.0
          %618 = vmatprep.subr.mxu0 0.0
          %619 = vmatpush1.msra.mxu0 0.0
          %620 = vmatprep.subr.mxu0 0.0
          %621 = vmatpush1.msra.mxu0 0.0
          %622 = vmatprep.subr.mxu0 0.0
          %623 = vmatpush1.msra.mxu0 0.0
          %624 = vmatprep.subr.mxu0 0.0
          %625 = vmatpush1.msra.mxu0 0.0
          %626 = vmatprep.subr.mxu0 0.0
          %627 = vmatpush1.msra.mxu0 0.0
          %628 = vmatprep.subr.mxu0 0.0
          %629 = vmatpush1.msra.mxu0 0.0
          %630 = vmatprep.subr.mxu0 0.0
          %631 = vmatpush1.msra.mxu0 0.0
          %632 = vmatprep.subr.mxu0 0.0
          %633 = vmatpush1.msra.mxu0 0.0
          %634 = vmatprep.subr.mxu0 0.0
          %635 = vmatpush1.msra.mxu0 0.0
          %636 = vmatprep.subr.mxu0 0.0
          %637 = vmatpush1.msra.mxu0 0.0
          %638 = vmatprep.subr.mxu0 0.0
          %639 = vmatpush1.msra.mxu0 0.0
          %640 = vmatprep.mubr.f32.mxu0 0.0
          %641 = vmatmul.mubr.f32.gmra.mrb[0].mxu0 %v493
          %v642 = vpop.f32.mrb[0].mxu0
          %v643 = vadd.f32 0.0, %v642
          %v644 = vpop.f32.mrb[0].mxu0
          %645 = vdwg.mxu0
          %v646 = vld [vmem:[%s454] sm:$0xff]
          %v647 = vld [vmem:[%s454 + $0x8] sm:$0xff]
          %v648 = vld [vmem:[%s454 + $0x10] sm:$0xff]
          %v649 = vld [vmem:[%s454 + $0x18] sm:$0xff]
          %v650 = vld [vmem:[%s4] sm:$0xff]
          %v651 = vld [vmem:[%s4 + $0x8] sm:$0xff]
          %v652 = vld [vmem:[%s4 + $0x10] sm:$0xff]
          %v653 = vld [vmem:[%s4 + $0x18] sm:$0xff]
          %v654 = vld [vmem:[%s4 + $0x20] sm:$0xff]
          %v655 = vld [vmem:[%s4 + $0x28] sm:$0xff]
          %v656 = vld [vmem:[%s5] sm:$0x3]
          %v658 = vlaneseq
          %v659 = vshrl.u32 %v658, 7
          %v660 = vsub.s32 0, %v659
          %v661 = vrot.slane %v656, %v660
          %v662 = vlaneseq
          %v663 = vshrl.u32 %v662, 7
          %v664 = vsub.s32 1, %v663
          %v665 = vrot.slane %v656, %v664
          %vm668 = vcmask 195584
          %v670 = vsel %vm668, %v646, 0
          %v673 = vsel %vm668, %v647, 0
          %v676 = vsel %vm668, %v648, 0
          %v679 = vsel %vm668, %v649, 0
          %681 = vmatprep.subr.mxu0 %v651
          %682 = vmatpush1.msra.mxu0 %v650
          %683 = vmatprep.subr.mxu0 %v653
          %684 = vmatpush1.msra.mxu0 %v652
          %685 = vmatprep.subr.mxu0 %v655
          %686 = vmatpush1.msra.mxu0 %v654
          %687 = vmatprep.subr.mxu0 0.0
          %688 = vmatpush1.msra.mxu0 0.0
          %689 = vmatprep.subr.mxu0 0.0
          %690 = vmatpush1.msra.mxu0 0.0
          %691 = vmatprep.subr.mxu0 0.0
          %692 = vmatpush1.msra.mxu0 0.0
          %693 = vmatprep.subr.mxu0 0.0
          %694 = vmatpush1.msra.mxu0 0.0
          %695 = vmatprep.subr.mxu0 0.0
          %696 = vmatpush1.msra.mxu0 0.0
          %697 = vmatprep.subr.mxu0 0.0
          %698 = vmatpush1.msra.mxu0 0.0
          %699 = vmatprep.subr.mxu0 0.0
          %700 = vmatpush1.msra.mxu0 0.0
          %701 = vmatprep.subr.mxu0 0.0
          %702 = vmatpush1.msra.mxu0 0.0
          %703 = vmatprep.subr.mxu0 0.0
          %704 = vmatpush1.msra.mxu0 0.0
          %705 = vmatprep.subr.mxu0 0.0
          %706 = vmatpush1.msra.mxu0 0.0
          %707 = vmatprep.subr.mxu0 0.0
          %708 = vmatpush1.msra.mxu0 0.0
          %709 = vmatprep.subr.mxu0 0.0
          %710 = vmatpush1.msra.mxu0 0.0
          %711 = vmatprep.subr.mxu0 0.0
          %712 = vmatpush1.msra.mxu0 0.0
          %713 = vmatprep.subr.mxu0 0.0
          %714 = vmatpush1.msra.mxu0 0.0
          %715 = vmatprep.subr.mxu0 0.0
          %716 = vmatpush1.msra.mxu0 0.0
          %717 = vmatprep.subr.mxu0 0.0
          %718 = vmatpush1.msra.mxu0 0.0
          %719 = vmatprep.subr.mxu0 0.0
          %720 = vmatpush1.msra.mxu0 0.0
          %721 = vmatprep.subr.mxu0 0.0
          %722 = vmatpush1.msra.mxu0 0.0
          %723 = vmatprep.subr.mxu0 0.0
          %724 = vmatpush1.msra.mxu0 0.0
          %725 = vmatprep.subr.mxu0 0.0
          %726 = vmatpush1.msra.mxu0 0.0
          %727 = vmatprep.subr.mxu0 0.0
          %728 = vmatpush1.msra.mxu0 0.0
          %729 = vmatprep.subr.mxu0 0.0
          %730 = vmatpush1.msra.mxu0 0.0
          %731 = vmatprep.subr.mxu0 0.0
          %732 = vmatpush1.msra.mxu0 0.0
          %733 = vmatprep.subr.mxu0 0.0
          %734 = vmatpush1.msra.mxu0 0.0
          %735 = vmatprep.subr.mxu0 0.0
          %736 = vmatpush1.msra.mxu0 0.0
          %737 = vmatprep.subr.mxu0 0.0
          %738 = vmatpush1.msra.mxu0 0.0
          %739 = vmatprep.subr.mxu0 0.0
          %740 = vmatpush1.msra.mxu0 0.0
          %741 = vmatprep.subr.mxu0 0.0
          %742 = vmatpush1.msra.mxu0 0.0
          %743 = vmatprep.subr.mxu0 0.0
          %744 = vmatpush1.msra.mxu0 0.0
          %745 = vmatprep.mubr.f32.mxu0 0.0
          %746 = vmatmul.mubr.f32.gmra.mrb[0].mxu0 %v670
          %v747 = vpop.f32.mrb[0].mxu0
          %v748 = vadd.f32 %v661, %v747
          %v749 = vpop.f32.mrb[0].mxu0
          %v750 = vadd.f32 %v665, %v749
          %751 = vmatprep.mubr.f32.mxu0 0.0
          %752 = vmatmul.mubr.f32.gmra.mrb[0].mxu0 %v673
          %v753 = vpop.f32.mrb[0].mxu0
          %v754 = vadd.f32 %v661, %v753
          %v755 = vpop.f32.mrb[0].mxu0
          %v756 = vadd.f32 %v665, %v755
          %757 = vmatprep.mubr.f32.mxu0 0.0
          %758 = vmatmul.mubr.f32.gmra.mrb[0].mxu0 %v676
          %v759 = vpop.f32.mrb[0].mxu0
          %v760 = vadd.f32 %v661, %v759
          %v761 = vpop.f32.mrb[0].mxu0
          %v762 = vadd.f32 %v665, %v761
          %763 = vmatprep.mubr.f32.mxu0 0.0
          %764 = vmatmul.mubr.f32.gmra.mrb[0].mxu0 %v679
          %v765 = vpop.f32.mrb[0].mxu0
          %v766 = vadd.f32 %v661, %v765
          %v767 = vpop.f32.mrb[0].mxu0
          %v768 = vadd.f32 %v665, %v767
          %769 = vdwg.mxu0
          %v770 = vadd.f32 %v748, %v572
          %v771 = vadd.f32 %v750, %v574
          %v772 = vadd.f32 %v754, %v572
          %v773 = vadd.f32 %v756, %v574
          %v774 = vadd.f32 %v760, %v572
          %v775 = vadd.f32 %v762, %v574
          %v776 = vadd.f32 %v766, %v572
          %v777 = vadd.f32 %v768, %v574
          %778 = vst [vmem:[%s435] sm:$0xff] %v770
          %779 = vst [vmem:[%s435 + $0x8] sm:$0xff] %v771
          %780 = vst [vmem:[%s435 + $0x10] sm:$0xff] %v772
          %781 = vst [vmem:[%s435 + $0x18] sm:$0xff] %v773
          %782 = vst [vmem:[%s435 + $0x20] sm:$0xff] %v774
          %783 = vst [vmem:[%s435 + $0x28] sm:$0xff] %v775
          %784 = vst [vmem:[%s435 + $0x30] sm:$0xff] %v776
          %785 = vst [vmem:[%s435 + $0x38] sm:$0xff] %v777
          %vm786 = vcmask 261120
          %787 = vst.msk [vmem:[%s449] sm:$0xff] %vm786, %v643
        $region56: #{tpu_custom_call.1} parent=51 // pred_fallthru
          _
        %v788 = vld [vmem:[%s6 + $0x10] sm:$0xff]
        %v789 = vld [vmem:[%s6 + $0x38] sm:$0x3]
        %vm790 = vcmask 80896
        %v792 = vsel %vm790, %v480, 0
        %vm794 = vcmask 1041408
        %v796 = vsel %vm794, %v789, 0
        %798 = vmatprep.subr.mxu0 0.0
        %799 = vmatpush1.msra.mxu0 %v788
        %800 = vmatprep.subr.mxu0 0.0
        %801 = vmatpush1.msra.mxu0 %v796
        %802 = vmatprep.subr.mxu0 0.0
        %803 = vmatpush1.msra.mxu0 0.0
        %804 = vmatprep.subr.mxu0 0.0
        %805 = vmatpush1.msra.mxu0 0.0
        %806 = vmatprep.subr.mxu0 0.0
        %807 = vmatpush1.msra.mxu0 0.0
        %808 = vmatprep.subr.mxu0 0.0
        %809 = vmatpush1.msra.mxu0 0.0
        %810 = vmatprep.subr.mxu0 0.0
        %811 = vmatpush1.msra.mxu0 0.0
        %812 = vmatprep.subr.mxu0 0.0
        %813 = vmatpush1.msra.mxu0 0.0
        %814 = vmatprep.subr.mxu0 0.0
        %815 = vmatpush1.msra.mxu0 0.0
        %816 = vmatprep.subr.mxu0 0.0
        %817 = vmatpush1.msra.mxu0 0.0
        %818 = vmatprep.subr.mxu0 0.0
        %819 = vmatpush1.msra.mxu0 0.0
        %820 = vmatprep.subr.mxu0 0.0
        %821 = vmatpush1.msra.mxu0 0.0
        %822 = vmatprep.subr.mxu0 0.0
        %823 = vmatpush1.msra.mxu0 0.0
        %824 = vmatprep.subr.mxu0 0.0
        %825 = vmatpush1.msra.mxu0 0.0
        %826 = vmatprep.subr.mxu0 0.0
        %827 = vmatpush1.msra.mxu0 0.0
        %828 = vmatprep.subr.mxu0 0.0
        %829 = vmatpush1.msra.mxu0 0.0
        %830 = vmatprep.subr.mxu0 0.0
        %831 = vmatpush1.msra.mxu0 0.0
        %832 = vmatprep.subr.mxu0 0.0
        %833 = vmatpush1.msra.mxu0 0.0
        %834 = vmatprep.subr.mxu0 0.0
        %835 = vmatpush1.msra.mxu0 0.0
        %836 = vmatprep.subr.mxu0 0.0
        %837 = vmatpush1.msra.mxu0 0.0
        %838 = vmatprep.subr.mxu0 0.0
        %839 = vmatpush1.msra.mxu0 0.0
        %840 = vmatprep.subr.mxu0 0.0
        %841 = vmatpush1.msra.mxu0 0.0
        %842 = vmatprep.subr.mxu0 0.0
        %843 = vmatpush1.msra.mxu0 0.0
        %844 = vmatprep.subr.mxu0 0.0
        %845 = vmatpush1.msra.mxu0 0.0
        %846 = vmatprep.subr.mxu0 0.0
        %847 = vmatpush1.msra.mxu0 0.0
        %848 = vmatprep.subr.mxu0 0.0
        %849 = vmatpush1.msra.mxu0 0.0
        %850 = vmatprep.subr.mxu0 0.0
        %851 = vmatpush1.msra.mxu0 0.0
        %852 = vmatprep.subr.mxu0 0.0
        %853 = vmatpush1.msra.mxu0 0.0
        %854 = vmatprep.subr.mxu0 0.0
        %855 = vmatpush1.msra.mxu0 0.0
        %856 = vmatprep.subr.mxu0 0.0
        %857 = vmatpush1.msra.mxu0 0.0
        %858 = vmatprep.subr.mxu0 0.0
        %859 = vmatpush1.msra.mxu0 0.0
        %860 = vmatprep.subr.mxu0 0.0
        %861 = vmatpush1.msra.mxu0 0.0
        %862 = vmatprep.mubr.f32.mxu0 0.0
        %863 = vmatmul.mubr.f32.gmra.mrb[0].mxu0 %v792
        %v864 = vpop.f32.mrb[0].mxu0
        %v865 = vadd.f32 0.0, %v864
        %v866 = vpop.f32.mrb[0].mxu0
        %867 = vdwg.mxu0
        %s868 = smul.u32 %s33, 8
        %s869 = scalar_lea.vmem %s458, %s868
        %v870 = vld [vmem:[%s869] sm:$0xff]
        %v871 = vld [vmem:[%s6 + $0x18] sm:$0xff]
        %v872 = vld [vmem:[%s6 + $0x40] sm:$0x3]
        %v874 = vsel %vm790, %v870, 0
        %v877 = vsel %vm794, %v872, 0
        %879 = vmatprep.subr.mxu0 0.0
        %880 = vmatpush1.msra.mxu0 %v871
        %881 = vmatprep.subr.mxu0 0.0
        %882 = vmatpush1.msra.mxu0 %v877
        %883 = vmatprep.subr.mxu0 0.0
        %884 = vmatpush1.msra.mxu0 0.0
        %885 = vmatprep.subr.mxu0 0.0
        %886 = vmatpush1.msra.mxu0 0.0
        %887 = vmatprep.subr.mxu0 0.0
        %888 = vmatpush1.msra.mxu0 0.0
        %889 = vmatprep.subr.mxu0 0.0
        %890 = vmatpush1.msra.mxu0 0.0
        %891 = vmatprep.subr.mxu0 0.0
        %892 = vmatpush1.msra.mxu0 0.0
        %893 = vmatprep.subr.mxu0 0.0
        %894 = vmatpush1.msra.mxu0 0.0
        %895 = vmatprep.subr.mxu0 0.0
        %896 = vmatpush1.msra.mxu0 0.0
        %897 = vmatprep.subr.mxu0 0.0
        %898 = vmatpush1.msra.mxu0 0.0
        %899 = vmatprep.subr.mxu0 0.0
        %900 = vmatpush1.msra.mxu0 0.0
        %901 = vmatprep.subr.mxu0 0.0
        %902 = vmatpush1.msra.mxu0 0.0
        %903 = vmatprep.subr.mxu0 0.0
        %904 = vmatpush1.msra.mxu0 0.0
        %905 = vmatprep.subr.mxu0 0.0
        %906 = vmatpush1.msra.mxu0 0.0
        %907 = vmatprep.subr.mxu0 0.0
        %908 = vmatpush1.msra.mxu0 0.0
        %909 = vmatprep.subr.mxu0 0.0
        %910 = vmatpush1.msra.mxu0 0.0
        %911 = vmatprep.subr.mxu0 0.0
        %912 = vmatpush1.msra.mxu0 0.0
        %913 = vmatprep.subr.mxu0 0.0
        %914 = vmatpush1.msra.mxu0 0.0
        %915 = vmatprep.subr.mxu0 0.0
        %916 = vmatpush1.msra.mxu0 0.0
        %917 = vmatprep.subr.mxu0 0.0
        %918 = vmatpush1.msra.mxu0 0.0
        %919 = vmatprep.subr.mxu0 0.0
        %920 = vmatpush1.msra.mxu0 0.0
        %921 = vmatprep.subr.mxu0 0.0
        %922 = vmatpush1.msra.mxu0 0.0
        %923 = vmatprep.subr.mxu0 0.0
        %924 = vmatpush1.msra.mxu0 0.0
        %925 = vmatprep.subr.mxu0 0.0
        %926 = vmatpush1.msra.mxu0 0.0
        %927 = vmatprep.subr.mxu0 0.0
        %928 = vmatpush1.msra.mxu0 0.0
        %929 = vmatprep.subr.mxu0 0.0
        %930 = vmatpush1.msra.mxu0 0.0
        %931 = vmatprep.subr.mxu0 0.0
        %932 = vmatpush1.msra.mxu0 0.0
        %933 = vmatprep.subr.mxu0 0.0
        %934 = vmatpush1.msra.mxu0 0.0
        %935 = vmatprep.subr.mxu0 0.0
        %936 = vmatpush1.msra.mxu0 0.0
        %937 = vmatprep.subr.mxu0 0.0
        %938 = vmatpush1.msra.mxu0 0.0
        %939 = vmatprep.subr.mxu0 0.0
        %940 = vmatpush1.msra.mxu0 0.0
        %941 = vmatprep.subr.mxu0 0.0
        %942 = vmatpush1.msra.mxu0 0.0
        %943 = vmatprep.mubr.f32.mxu0 0.0
        %944 = vmatmul.mubr.f32.gmra.mrb[0].mxu0 %v874
        %v945 = vpop.f32.mrb[0].mxu0
        %v946 = vadd.f32 0.0, %v945
        %v947 = vpop.f32.mrb[0].mxu0
        %948 = vdwg.mxu0
        %v949 = vld [vmem:[%s467] sm:$0xff]
        %v950 = vld [vmem:[%s467 + $0x8] sm:$0xff]
        %v951 = vld [vmem:[%s467 + $0x10] sm:$0xff]
        %v952 = vld [vmem:[%s467 + $0x18] sm:$0xff]
        %v953 = vld [vmem:[%s467 + $0x20] sm:$0xff]
        %v954 = vld [vmem:[%s467 + $0x28] sm:$0xff]
        %v955 = vld [vmem:[%s467 + $0x30] sm:$0xff]
        %v956 = vld [vmem:[%s467 + $0x38] sm:$0xff]
        %v957 = vld [vmem:[%s477] sm:$0xff]
        %v958 = vld [vmem:[%s477 + $0x8] sm:$0xff]
        %v959 = vld [vmem:[%s477 + $0x10] sm:$0xff]
        %v960 = vld [vmem:[%s477 + $0x18] sm:$0xff]
        %v961 = vld [vmem:[%s477 + $0x20] sm:$0xff]
        %v962 = vld [vmem:[%s477 + $0x28] sm:$0xff]
        %v963 = vld [vmem:[%s477 + $0x30] sm:$0xff]
        %v964 = vld [vmem:[%s477 + $0x38] sm:$0xff]
        %vm965 = vcmp.eq.s32.totalorder %v957, 1
        %vm966 = vcmp.eq.s32.totalorder %v958, 1
        %vm967 = vcmp.eq.s32.totalorder %v959, 1
        %vm968 = vcmp.eq.s32.totalorder %v960, 1
        %vm969 = vcmp.eq.s32.totalorder %v961, 1
        %vm970 = vcmp.eq.s32.totalorder %v962, 1
        %vm971 = vcmp.eq.s32.totalorder %v963, 1
        %vm972 = vcmp.eq.s32.totalorder %v964, 1
        %v973 = vsel %vm965, %v949, 100
        %v974 = vsel %vm966, %v950, 100
        %v975 = vsel %vm967, %v951, 100
        %v976 = vsel %vm968, %v952, 100
        %v977 = vsel %vm969, %v953, 100
        %v978 = vsel %vm970, %v954, 100
        %v979 = vsel %vm971, %v955, 100
        %v980 = vsel %vm972, %v956, 100
        %v981 = vsub.s32 %v973, 4294967264
        %v982 = vsub.s32 %v974, 4294967264
        %v983 = vsub.s32 %v975, 4294967264
        %v984 = vsub.s32 %v976, 4294967264
        %v985 = vsub.s32 %v977, 4294967264
        %v986 = vsub.s32 %v978, 4294967264
        %v987 = vsub.s32 %v979, 4294967264
        %v988 = vsub.s32 %v980, 4294967264
        %vm989 = vcmp.gt.s32.totalorder %v981, 0
        %v990 = vsel %vm989, %v981, 0
        %vm991 = vcmp.gt.s32.totalorder %v982, 0
        %v992 = vsel %vm991, %v982, 0
        %vm993 = vcmp.gt.s32.totalorder %v983, 0
        %v994 = vsel %vm993, %v983, 0
        %vm995 = vcmp.gt.s32.totalorder %v984, 0
        %v996 = vsel %vm995, %v984, 0
        %vm997 = vcmp.gt.s32.totalorder %v985, 0
        %v998 = vsel %vm997, %v985, 0
        %vm999 = vcmp.gt.s32.totalorder %v986, 0
        %v1000 = vsel %vm999, %v986, 0
        %vm1001 = vcmp.gt.s32.totalorder %v987, 0
        %v1002 = vsel %vm1001, %v987, 0
        %vm1003 = vcmp.gt.s32.totalorder %v988, 0
        %v1004 = vsel %vm1003, %v988, 0
        %vm1005 = vcmp.lt.s32.totalorder %v990, 64
        %v1006 = vsel %vm1005, %v990, 64
        %vm1007 = vcmp.lt.s32.totalorder %v992, 64
        %v1008 = vsel %vm1007, %v992, 64
        %vm1009 = vcmp.lt.s32.totalorder %v994, 64
        %v1010 = vsel %vm1009, %v994, 64
        %vm1011 = vcmp.lt.s32.totalorder %v996, 64
        %v1012 = vsel %vm1011, %v996, 64
        %vm1013 = vcmp.lt.s32.totalorder %v998, 64
        %v1014 = vsel %vm1013, %v998, 64
        %vm1015 = vcmp.lt.s32.totalorder %v1000, 64
        %v1016 = vsel %vm1015, %v1000, 64
        %vm1017 = vcmp.lt.s32.totalorder %v1002, 64
        %v1018 = vsel %vm1017, %v1002, 64
        %vm1019 = vcmp.lt.s32.totalorder %v1004, 64
        %v1020 = vsel %vm1019, %v1004, 64
        %v1021 = vadd.s32 %v957, 65
        %v1022 = vadd.s32 %v958, 65
        %v1023 = vadd.s32 %v959, 65
        %v1024 = vadd.s32 %v960, 65
        %v1025 = vadd.s32 %v961, 65
        %v1026 = vadd.s32 %v962, 65
        %v1027 = vadd.s32 %v963, 65
        %v1028 = vadd.s32 %v964, 65
        %v1029 = vlaneseq
        %v1030 = vand.u32 %v1029, 127
        %1031 = vset.pattern.permute.xlu0 0
        %1032 = vperm.xlu0 %1031, %v1006
        %v1033 = vpop.permute.xlu0 %1032
        %1034 = vset.pattern.permute.xlu0 0
        %1035 = vperm.xlu0 %1034, %v1008
        %v1036 = vpop.permute.xlu0 %1035
        %1037 = vset.pattern.permute.xlu0 0
        %1038 = vperm.xlu0 %1037, %v1010
        %v1039 = vpop.permute.xlu0 %1038
        %1040 = vset.pattern.permute.xlu0 0
        %1041 = vperm.xlu0 %1040, %v1012
        %v1042 = vpop.permute.xlu0 %1041
        %1043 = vset.pattern.permute.xlu0 0
        %1044 = vperm.xlu0 %1043, %v1014
        %v1045 = vpop.permute.xlu0 %1044
        %1046 = vset.pattern.permute.xlu0 0
        %1047 = vperm.xlu0 %1046, %v1016
        %v1048 = vpop.permute.xlu0 %1047
        %1049 = vset.pattern.permute.xlu0 0
        %1050 = vperm.xlu0 %1049, %v1018
        %v1051 = vpop.permute.xlu0 %1050
        %1052 = vset.pattern.permute.xlu0 0
        %1053 = vperm.xlu0 %1052, %v1020
        %v1054 = vpop.permute.xlu0 %1053
        %vm1055 = vcmp.eq.s32.totalorder %v1030, %v1033
        %vm1056 = vcmp.eq.s32.totalorder %v1030, %v1036
        %vm1057 = vcmp.eq.s32.totalorder %v1030, %v1039
        %vm1058 = vcmp.eq.s32.totalorder %v1030, %v1042
        %vm1059 = vcmp.eq.s32.totalorder %v1030, %v1045
        %vm1060 = vcmp.eq.s32.totalorder %v1030, %v1048
        %vm1061 = vcmp.eq.s32.totalorder %v1030, %v1051
        %vm1062 = vcmp.eq.s32.totalorder %v1030, %v1054
        %1063 = vset.pattern.permute.xlu0 0
        %1064 = vperm.xlu0 %1063, %v1021
        %v1065 = vpop.permute.xlu0 %1064
        %1066 = vset.pattern.permute.xlu0 0
        %1067 = vperm.xlu0 %1066, %v1022
        %v1068 = vpop.permute.xlu0 %1067
        %1069 = vset.pattern.permute.xlu0 0
        %1070 = vperm.xlu0 %1069, %v1023
        %v1071 = vpop.permute.xlu0 %1070
        %1072 = vset.pattern.permute.xlu0 0
        %1073 = vperm.xlu0 %1072, %v1024
        %v1074 = vpop.permute.xlu0 %1073
        %1075 = vset.pattern.permute.xlu0 0
        %1076 = vperm.xlu0 %1075, %v1025
        %v1077 = vpop.permute.xlu0 %1076
        %1078 = vset.pattern.permute.xlu0 0
        %1079 = vperm.xlu0 %1078, %v1026
        %v1080 = vpop.permute.xlu0 %1079
        %1081 = vset.pattern.permute.xlu0 0
        %1082 = vperm.xlu0 %1081, %v1027
        %v1083 = vpop.permute.xlu0 %1082
        %1084 = vset.pattern.permute.xlu0 0
        %1085 = vperm.xlu0 %1084, %v1028
        %v1086 = vpop.permute.xlu0 %1085
        %vm1087 = vcmp.eq.s32.totalorder %v1030, %v1065
        %vm1088 = vcmp.eq.s32.totalorder %v1030, %v1068
        %vm1089 = vcmp.eq.s32.totalorder %v1030, %v1071
        %vm1090 = vcmp.eq.s32.totalorder %v1030, %v1074
        %vm1091 = vcmp.eq.s32.totalorder %v1030, %v1077
        %vm1092 = vcmp.eq.s32.totalorder %v1030, %v1080
        %vm1093 = vcmp.eq.s32.totalorder %v1030, %v1083
        %vm1094 = vcmp.eq.s32.totalorder %v1030, %v1086
        %vm1095 = vmor %vm1055, %vm1087
        %vm1096 = vmor %vm1056, %vm1088
        %vm1097 = vmor %vm1057, %vm1089
        %vm1098 = vmor %vm1058, %vm1090
        %vm1099 = vmor %vm1059, %vm1091
        %vm1100 = vmor %vm1060, %vm1092
        %vm1101 = vmor %vm1061, %vm1093
        %vm1102 = vmor %vm1062, %vm1094
        %v1103 = vsel %vm1095, 1, 0
        %v1104 = vsel %vm1096, 1, 0
        %v1105 = vsel %vm1097, 1, 0
        %v1106 = vsel %vm1098, 1, 0
        %v1107 = vsel %vm1099, 1, 0
        %v1108 = vsel %vm1100, 1, 0
        %v1109 = vsel %vm1101, 1, 0
        %v1110 = vsel %vm1102, 1, 0
        %v1111 = vcvt.s32.f32 %v1103
        %v1112 = vcvt.s32.f32 %v1104
        %v1113 = vcvt.s32.f32 %v1105
        %v1114 = vcvt.s32.f32 %v1106
        %v1115 = vcvt.s32.f32 %v1107
        %v1116 = vcvt.s32.f32 %v1108
        %v1117 = vcvt.s32.f32 %v1109
        %v1118 = vcvt.s32.f32 %v1110
        %v1119 = vld [vmem:[%s7] sm:$0xff]
        %v1120 = vld [vmem:[%s7 + $0x8] sm:$0xff]
        %v1121 = vld [vmem:[%s7 + $0x10] sm:$0xff]
        %v1122 = vld [vmem:[%s7 + $0x18] sm:$0xff]
        %v1123 = vld [vmem:[%s7 + $0x20] sm:$0xff]
        %v1124 = vld [vmem:[%s7 + $0x28] sm:$0xff]
        %v1125 = vld [vmem:[%s7 + $0x30] sm:$0xff]
        %v1126 = vld [vmem:[%s7 + $0x38] sm:$0xff]
        %v1127 = vld [vmem:[%s7 + $0x40] sm:$0x7]
        %vm1128 = vcmask 547840
        %v1130 = vsel %vm1128, %v1111, 0
        %v1133 = vsel %vm1128, %v1112, 0
        %v1136 = vsel %vm1128, %v1113, 0
        %v1139 = vsel %vm1128, %v1114, 0
        %v1142 = vsel %vm1128, %v1115, 0
        %v1145 = vsel %vm1128, %v1116, 0
        %v1148 = vsel %vm1128, %v1117, 0
        %v1151 = vsel %vm1128, %v1118, 0
        %vm1153 = vcmask 1042432
        %v1155 = vsel %vm1153, %v1127, 0
        %1157 = vmatprep.subr.mxu0 0.0
        %1158 = vmatpush1.msra.mxu0 %v1119
        %1159 = vmatprep.subr.mxu0 0.0
        %1160 = vmatpush1.msra.mxu0 %v1120
        %1161 = vmatprep.subr.mxu0 0.0
        %1162 = vmatpush1.msra.mxu0 %v1121
        %1163 = vmatprep.subr.mxu0 0.0
        %1164 = vmatpush1.msra.mxu0 %v1122
        %1165 = vmatprep.subr.mxu0 0.0
        %1166 = vmatpush1.msra.mxu0 %v1123
        %1167 = vmatprep.subr.mxu0 0.0
        %1168 = vmatpush1.msra.mxu0 %v1124
        %1169 = vmatprep.subr.mxu0 0.0
        %1170 = vmatpush1.msra.mxu0 %v1125
        %1171 = vmatprep.subr.mxu0 0.0
        %1172 = vmatpush1.msra.mxu0 %v1126
        %1173 = vmatprep.subr.mxu0 0.0
        %1174 = vmatpush1.msra.mxu0 %v1155
        %1175 = vmatprep.subr.mxu0 0.0
        %1176 = vmatpush1.msra.mxu0 0.0
        %1177 = vmatprep.subr.mxu0 0.0
        %1178 = vmatpush1.msra.mxu0 0.0
        %1179 = vmatprep.subr.mxu0 0.0
        %1180 = vmatpush1.msra.mxu0 0.0
        %1181 = vmatprep.subr.mxu0 0.0
        %1182 = vmatpush1.msra.mxu0 0.0
        %1183 = vmatprep.subr.mxu0 0.0
        %1184 = vmatpush1.msra.mxu0 0.0
        %1185 = vmatprep.subr.mxu0 0.0
        %1186 = vmatpush1.msra.mxu0 0.0
        %1187 = vmatprep.subr.mxu0 0.0
        %1188 = vmatpush1.msra.mxu0 0.0
        %1189 = vmatprep.subr.mxu0 0.0
        %1190 = vmatpush1.msra.mxu0 0.0
        %1191 = vmatprep.subr.mxu0 0.0
        %1192 = vmatpush1.msra.mxu0 0.0
        %1193 = vmatprep.subr.mxu0 0.0
        %1194 = vmatpush1.msra.mxu0 0.0
        %1195 = vmatprep.subr.mxu0 0.0
        %1196 = vmatpush1.msra.mxu0 0.0
        %1197 = vmatprep.subr.mxu0 0.0
        %1198 = vmatpush1.msra.mxu0 0.0
        %1199 = vmatprep.subr.mxu0 0.0
        %1200 = vmatpush1.msra.mxu0 0.0
        %1201 = vmatprep.subr.mxu0 0.0
        %1202 = vmatpush1.msra.mxu0 0.0
        %1203 = vmatprep.subr.mxu0 0.0
        %1204 = vmatpush1.msra.mxu0 0.0
        %1205 = vmatprep.subr.mxu0 0.0
        %1206 = vmatpush1.msra.mxu0 0.0
        %1207 = vmatprep.subr.mxu0 0.0
        %1208 = vmatpush1.msra.mxu0 0.0
        %1209 = vmatprep.subr.mxu0 0.0
        %1210 = vmatpush1.msra.mxu0 0.0
        %1211 = vmatprep.subr.mxu0 0.0
        %1212 = vmatpush1.msra.mxu0 0.0
        %1213 = vmatprep.subr.mxu0 0.0
        %1214 = vmatpush1.msra.mxu0 0.0
        %1215 = vmatprep.subr.mxu0 0.0
        %1216 = vmatpush1.msra.mxu0 0.0
        %1217 = vmatprep.subr.mxu0 0.0
        %1218 = vmatpush1.msra.mxu0 0.0
        %1219 = vmatprep.subr.mxu0 0.0
        %1220 = vmatpush1.msra.mxu0 0.0
        %1221 = vmatprep.mubr.f32.mxu0 0.0
        %1222 = vmatmul.mubr.f32.gmra.mrb[0].mxu0 %v1130
        %v1223 = vpop.f32.mrb[0].mxu0
        %v1224 = vadd.f32 0.0, %v1223
        %v1225 = vpop.f32.mrb[0].mxu0
        %1226 = vmatprep.mubr.f32.mxu0 0.0
        %1227 = vmatmul.mubr.f32.gmra.mrb[0].mxu0 %v1133
        %v1228 = vpop.f32.mrb[0].mxu0
        %v1229 = vadd.f32 0.0, %v1228
        %v1230 = vpop.f32.mrb[0].mxu0
        %1231 = vmatprep.mubr.f32.mxu0 0.0
        %1232 = vmatmul.mubr.f32.gmra.mrb[0].mxu0 %v1136
        %v1233 = vpop.f32.mrb[0].mxu0
        %v1234 = vadd.f32 0.0, %v1233
        %v1235 = vpop.f32.mrb[0].mxu0
        %1236 = vmatprep.mubr.f32.mxu0 0.0
        %1237 = vmatmul.mubr.f32.gmra.mrb[0].mxu0 %v1139
        %v1238 = vpop.f32.mrb[0].mxu0
        %v1239 = vadd.f32 0.0, %v1238
        %v1240 = vpop.f32.mrb[0].mxu0
        %1241 = vmatprep.mubr.f32.mxu0 0.0
        %1242 = vmatmul.mubr.f32.gmra.mrb[0].mxu0 %v1142
        %v1243 = vpop.f32.mrb[0].mxu0
        %v1244 = vadd.f32 0.0, %v1243
        %v1245 = vpop.f32.mrb[0].mxu0
        %1246 = vmatprep.mubr.f32.mxu0 0.0
        %1247 = vmatmul.mubr.f32.gmra.mrb[0].mxu0 %v1145
        %v1248 = vpop.f32.mrb[0].mxu0
        %v1249 = vadd.f32 0.0, %v1248
        %v1250 = vpop.f32.mrb[0].mxu0
        %1251 = vmatprep.mubr.f32.mxu0 0.0
        %1252 = vmatmul.mubr.f32.gmra.mrb[0].mxu0 %v1148
        %v1253 = vpop.f32.mrb[0].mxu0
        %v1254 = vadd.f32 0.0, %v1253
        %v1255 = vpop.f32.mrb[0].mxu0
        %1256 = vmatprep.mubr.f32.mxu0 0.0
        %1257 = vmatmul.mubr.f32.gmra.mrb[0].mxu0 %v1151
        %v1258 = vpop.f32.mrb[0].mxu0
        %v1259 = vadd.f32 0.0, %v1258
        %v1260 = vpop.f32.mrb[0].mxu0
        %1261 = vdwg.mxu0
        %v1263 = vcombine.high %v946, %v946
        %v1265 = vunpack.c.l.s4 1966171168
        %v1266 = vunpack.c.0.s8 %v1265
        %v1267 = vlaneseq
        %v1268 = vshrl.u32 %v1267, 7
        %v1269 = vsub.s32 %v1266, %v1268
        %v1270 = vrot.slane %v946, %v1269
        %v1272 = vunpack.c.l.s4 1966171168
        %v1273 = vunpack.c.0.s8 %v1272
        %v1274 = vlaneseq
        %v1275 = vshrl.u32 %v1274, 7
        %v1276 = vsub.s32 %v1273, %v1275
        %v1277 = vrot.slane %v1263, %v1276
        %v1278 = vcombine.high %v1270, %v1270
        %v1279 = vcombine.high %v1277, %v1277
        %v1281 = vunpack.c.l.s4 1966171168
        %v1282 = vunpack.c.0.s8 %v1281
        %v1283 = vlaneseq
        %v1284 = vshrl.u32 %v1283, 7
        %v1285 = vsub.s32 %v1282, %v1284
        %v1286 = vrot.slane %v1270, %v1285
        %v1288 = vunpack.c.l.s4 1966171168
        %v1289 = vunpack.c.0.s8 %v1288
        %v1290 = vlaneseq
        %v1291 = vshrl.u32 %v1290, 7
        %v1292 = vsub.s32 %v1289, %v1291
        %v1293 = vrot.slane %v1277, %v1292
        %v1295 = vunpack.c.l.s4 1966171168
        %v1296 = vunpack.c.0.s8 %v1295
        %v1297 = vlaneseq
        %v1298 = vshrl.u32 %v1297, 7
        %v1299 = vsub.s32 %v1296, %v1298
        %v1300 = vrot.slane %v1278, %v1299
        %v1302 = vunpack.c.l.s4 1966171168
        %v1303 = vunpack.c.0.s8 %v1302
        %v1304 = vlaneseq
        %v1305 = vshrl.u32 %v1304, 7
        %v1306 = vsub.s32 %v1303, %v1305
        %v1307 = vrot.slane %v1279, %v1306
        %v1308 = vcombine.high %v1286, %v1286
        %v1309 = vcombine.high %v1293, %v1293
        %v1310 = vcombine.high %v1300, %v1300
        %v1311 = vcombine.high %v1307, %v1307
        %v1312 = vlaneseq
        %v1313 = vshrl.u32 %v1312, 7
        %v1314 = vsub.s32 0, %v1313
        %v1315 = vrot.slane %v1286, %v1314
        %v1316 = vlaneseq
        %v1317 = vshrl.u32 %v1316, 7
        %v1318 = vsub.s32 0, %v1317
        %v1319 = vrot.slane %v1300, %v1318
        %v1320 = vlaneseq
        %v1321 = vshrl.u32 %v1320, 7
        %v1322 = vsub.s32 0, %v1321
        %v1323 = vrot.slane %v1308, %v1322
        %v1324 = vlaneseq
        %v1325 = vshrl.u32 %v1324, 7
        %v1326 = vsub.s32 0, %v1325
        %v1327 = vrot.slane %v1310, %v1326
        %v1328 = vlaneseq
        %v1329 = vshrl.u32 %v1328, 7
        %v1330 = vsub.s32 0, %v1329
        %v1331 = vrot.slane %v1293, %v1330
        %v1332 = vlaneseq
        %v1333 = vshrl.u32 %v1332, 7
        %v1334 = vsub.s32 0, %v1333
        %v1335 = vrot.slane %v1307, %v1334
        %v1336 = vlaneseq
        %v1337 = vshrl.u32 %v1336, 7
        %v1338 = vsub.s32 0, %v1337
        %v1339 = vrot.slane %v1309, %v1338
        %v1340 = vlaneseq
        %v1341 = vshrl.u32 %v1340, 7
        %v1342 = vsub.s32 0, %v1341
        %v1343 = vrot.slane %v1311, %v1342
        %v1352 = vadd.f32 %v865, %v1315
        %v1353 = vadd.f32 %v865, %v1319
        %v1354 = vadd.f32 %v865, %v1323
        %v1355 = vadd.f32 %v865, %v1327
        %v1356 = vadd.f32 %v865, %v1331
        %v1357 = vadd.f32 %v865, %v1335
        %v1358 = vadd.f32 %v865, %v1339
        %v1359 = vadd.f32 %v865, %v1343
        %v1360 = vadd.f32 %v1352, %v1224
        %v1361 = vadd.f32 %v1353, %v1229
        %v1362 = vadd.f32 %v1354, %v1234
        %v1363 = vadd.f32 %v1355, %v1239
        %v1364 = vadd.f32 %v1356, %v1244
        %v1365 = vadd.f32 %v1357, %v1249
        %v1366 = vadd.f32 %v1358, %v1254
        %v1367 = vadd.f32 %v1359, %v1259
        %1368 = vst [vmem:[%s442] sm:$0xff] %v1360
        %1369 = vst [vmem:[%s442 + $0x8] sm:$0xff] %v1361
        %1370 = vst [vmem:[%s442 + $0x10] sm:$0xff] %v1362
        %1371 = vst [vmem:[%s442 + $0x18] sm:$0xff] %v1363
        %1372 = vst [vmem:[%s442 + $0x20] sm:$0xff] %v1364
        %1373 = vst [vmem:[%s442 + $0x28] sm:$0xff] %v1365
        %1374 = vst [vmem:[%s442 + $0x30] sm:$0xff] %v1366
        %1375 = vst [vmem:[%s442 + $0x38] sm:$0xff] %v1367
        %s1376 = sand.u32 %s240, 1
        %s1377 = scalar_lea.sflag [#allocation3], %s1376
        %s1378 = sand.u32 %s240, 1
        %s1379 = smul.addr %s1378, 64
        %s1380 = scalar_lea.vmem [#allocation2], %s1379
        %s1381 = sand.u32 %s28, 1
        %s1382 = scalar_lea.sflag [#allocation5], %s1381
        %s1383 = sand.u32 %s268, 1
        %s1384 = smul.addr %s1383, 64
        %s1385 = scalar_lea.vmem [#allocation4], %s1384
        %s1386 = sand.u32 %s28, 1
        %s1387 = scalar_lea.sflag [#allocation5], %s1386
        %s1388 = sand.u32 %s294, 1
        %s1389 = smul.addr %s1388, 8
        %s1390 = scalar_lea.vmem [#allocation6], %s1389
        // Predicated region
        $region57: #{tpu_custom_call.1} parent=51 // pred_check
          %p1391 = pneg %p250
        $region58: #{tpu_custom_call.1} parent=51 // pred_check_branch
          %1393 = sbr.rel (%p1391) target = $region60
        $region59: #{tpu_custom_call.1} parent=51 // pred_region
          %s1395 = ssub.s32 1024, 1024
          %1396 = vsyncadd %s1377, %s1395
          %s1397 = smul.addr %s32, 8
          %s1398 = smul.addr %s1397, 128
          %s1399 = scalar_lea.hbm %s8, %s1398
          %s1400 = sshll.u32 %s1380, 4
          %s1401 = int_to_ptr.vmem [resolvable:$true] %s1400
          %1406 = dma.vmem_to_hbm [thread:$0]  %s1401, 1024, %s1399, %s1377, 256, 256, 16
        $region60: #{tpu_custom_call.1} parent=51 // pred_fallthru
          _
        // Predicated region
        $region61: #{tpu_custom_call.1} parent=51 // pred_check
          %p1407 = pneg %p278
        $region62: #{tpu_custom_call.1} parent=51 // pred_check_branch
          %1409 = sbr.rel (%p1407) target = $region64
        $region63: #{tpu_custom_call.1} parent=51 // pred_region
          %s1410 = smul.u32 8, %s33
          %s1412 = ssub.s32 1024, 1024
          %1413 = vsyncadd %s1382, %s1412
          %s1414 = smul.addr %s32, 8
          %s1415 = sadd.s32 %s1410, %s1414
          %s1416 = smul.addr %s1415, 128
          %s1417 = scalar_lea.hbm %s9, %s1416
          %s1418 = sshll.u32 %s1385, 4
          %s1419 = int_to_ptr.vmem [resolvable:$true] %s1418
          %1424 = dma.vmem_to_hbm [thread:$0]  %s1419, 1024, %s1417, %s1382, 128, 128, 8
        $region64: #{tpu_custom_call.1} parent=51 // pred_fallthru
          _
        // Predicated region
        $region65: #{tpu_custom_call.1} parent=51 // pred_check
          %p1425 = pneg %p304
        $region66: #{tpu_custom_call.1} parent=51 // pred_check_branch
          %1427 = sbr.rel (%p1425) target = $region68
        $region67: #{tpu_custom_call.1} parent=51 // pred_region
          %s1429 = ssub.s32 128, 128
          %1430 = vsyncadd %s1387, %s1429
          %s1431 = smul.addr %s32, 128
          %s1432 = scalar_lea.hbm %s10, %s1431
          %s1434 = sshll.u32 %s1390, 4
          %s1435 = int_to_ptr.vmem [resolvable:$true] %s1434
          %1437 = dma.vmem_to_hbm [thread:$0]  %s1435, 128, %s1432, %s1387
        $region68: #{tpu_custom_call.1} parent=51 // pred_fallthru
          _
      $region52: #{tpu_custom_call.1} parent=5 // pred_fallthru
        _
      %p1438 = scmp.le.s32.totalorder 2, %s23
      // Predicated region
      $region69: #{tpu_custom_call.1} parent=5 // pred_check
        %p1439 = pneg %p1438
      $region70: #{tpu_custom_call.1} parent=5 // pred_check_branch
        %1441 = sbr.rel (%p1439) target = $region72
      $region71: #{tpu_custom_call.1} parent=5 // pred_region
        %s1442 = ssub.s32 %s23, 2
        // Predicated region
        $region73: #{tpu_custom_call.1} parent=71 // pred_check
          %p1443 = pneg %p256
        $region74: #{tpu_custom_call.1} parent=71 // pred_check_branch
          %1445 = sbr.rel (%p1443) target = $region76
        $region75: #{tpu_custom_call.1} parent=71 // pred_region
          %s1446 = sand.u32 %s241, 1
          %s1447 = scalar_lea.sflag [#allocation3], %s1446
          %s1448 = sand.u32 %s241, 1
          %s1449 = smul.addr %s1448, 64
          %s1450 = scalar_lea.vmem [#allocation2], %s1449
          %1451 = dma.done %s1447, 1024
        $region76: #{tpu_custom_call.1} parent=71 // pred_fallthru
          _
        // Predicated region
        $region77: #{tpu_custom_call.1} parent=71 // pred_check
          %p1452 = pneg %p284
        $region78: #{tpu_custom_call.1} parent=71 // pred_check_branch
          %1454 = sbr.rel (%p1452) target = $region80
        $region79: #{tpu_custom_call.1} parent=71 // pred_region
          %s1455 = sand.u32 %s29, 1
          %s1456 = scalar_lea.sflag [#allocation5], %s1455
          %s1457 = sand.u32 %s269, 1
          %s1458 = smul.addr %s1457, 64
          %s1459 = scalar_lea.vmem [#allocation4], %s1458
          %1460 = dma.done %s1456, 1024
        $region80: #{tpu_custom_call.1} parent=71 // pred_fallthru
          _
        // Predicated region
        $region81: #{tpu_custom_call.1} parent=71 // pred_check
          %p1461 = pneg %p310
        $region82: #{tpu_custom_call.1} parent=71 // pred_check_branch
          %1463 = sbr.rel (%p1461) target = $region84
        $region83: #{tpu_custom_call.1} parent=71 // pred_region
          %s1464 = sand.u32 %s29, 1
          %s1465 = scalar_lea.sflag [#allocation5], %s1464
          %s1466 = sand.u32 %s295, 1
          %s1467 = smul.addr %s1466, 8
          %s1468 = scalar_lea.vmem [#allocation6], %s1467
          %1469 = dma.done %s1465, 128
        $region84: #{tpu_custom_call.1} parent=71 // pred_fallthru
          _
      $region72: #{tpu_custom_call.1} parent=5 // pred_fallthru
        _
    $region6: #{tpu_custom_call.1} parent=1 // loop_footer
      %s27 = sadd.s32 1, %s23
    $region7: #{tpu_custom_call.1} parent=1 // loop_footer_branch
      %22 = sbr.rel target = $region3
    $region8: #{tpu_custom_call.1} parent=1 // loop_exit
      _
    %1470 = vsyncpa [#allocation3], 1
    %s1471 = scalar_lea.sflag [#allocation3], 1
    %1472 = vsyncpa %s1471, 1
    %1473 = vsyncpa [#allocation5], 1
    %s1474 = scalar_lea.sflag [#allocation5], 1
    %1475 = vsyncpa %s1474, 1

</llo_original>
